<compile_context>
chip_gen: v5e
topology: v5e:2x2
jax: 0.10.0
libtpu: 0.0.40
codegen_flags: <defaults>
</compile_context>

<pallas_src>
import functools
import math

import jax
import jax.numpy as jnp
from jax.experimental import pallas as pl
from jax.experimental.pallas import tpu as pltpu

# ---------------- configuration (small shapes, same structure as vit_base_patch16_384) ----------------
B = 2            # batch (per image stream)
C = 3            # image channels
IMG = 32         # image side (real model: 384)
PATCH = 16       # patch size (same as real model)
D = 64           # embed dim (real model: 768)
NH = 4           # num heads (real model: 12)
HD = D // NH     # head dim
MLP = 4 * D      # MLP hidden dim (mlp_ratio=4)
DEPTH = 2        # transformer depth (real model: 12)
HIDDEN = 100     # head hidden dim (module default hidden=100)
HID_PAD = 128    # head hidden padded to a lane-dense width
OUT_PAD = 128    # fc2 output padded to a lane-dense width (sliced back to 2)
EPS = 1e-6       # timm ViT LayerNorm eps

VMEM_LIMIT = 32 * 1024 * 1024   # explicit scoped-VMEM budget (safe on v5e/v6e/v7x)


@functools.lru_cache(maxsize=1)
def _tile_prefs():
    """(tm, tn, tk) tile preferences; 128-wide/deep on v5e (4x128^2 MXU), 256 on v6e/v7x."""
    try:
        kind = jax.devices()[0].device_kind.lower()
    except Exception:
        kind = ""
    if "v5 lite" in kind or "v5e" in kind or "v5litepod" in kind:
        return 256, 128, 128
    return 256, 256, 256


def _pick_tile(dim, pref, align):
    """Largest `align`-aligned divisor of `dim` that is <= pref; full dim if dim <= pref."""
    if dim <= pref:
        return dim
    for t in range(pref, 0, -1):
        if dim % t == 0 and t % align == 0:
            return t
    # TODO(synk): pad + mask the tail instead of falling back to the full dimension
    # (a full-dim tile would blow VMEM at real ViT-Base/384 scale).
    return dim


def _apply_act(y, act):
    if act == "gelu":
        # TODO(synk): PyTorch nn.GELU (timm ViT) is exact erf GELU; tanh approximation used
        # here to stay on ops guaranteed to lower through Mosaic.
        c = math.sqrt(2.0 / math.pi)
        return 0.5 * y * (1.0 + jnp.tanh(c * (y + 0.044715 * y * y * y)))
    if act == "relu":
        return jnp.maximum(y, 0.0)
    return y


# ---------------------------------- tiled matmul + bias (patch embedding) ----------------------------------
def _mm_kernel(x_ref, w_ref, b_ref, o_ref, acc_ref, *, act):
    @pl.when(pl.program_id(2) == 0)
    def _():
        acc_ref[...] = jnp.zeros_like(acc_ref)

    acc_ref[...] += jnp.dot(x_ref[...], w_ref[...],
                            preferred_element_type=jnp.float32)

    @pl.when(pl.program_id(2) == pl.num_programs(2) - 1)
    def _():
        y = acc_ref[...] + b_ref[...].astype(jnp.float32)
        y = _apply_act(y, act)
        o_ref[...] = y.astype(o_ref.dtype)


def matmul_bias(x, w, b, act=None, out_dtype=jnp.float32):
    M, K = x.shape
    _, N = w.shape
    tm_pref, tn_pref, tk_pref = _tile_prefs()
    tm = _pick_tile(M, tm_pref, align=8)
    tn = _pick_tile(N, tn_pref, align=128)
    tk = _pick_tile(K, tk_pref, align=128)
    # v7x has 2 TensorCores per chip: make sure at least one *parallel* grid axis has
    # extent >= 2 so the second core is not idle (no-op on single-TC v5e/v6e).
    if M // tm == 1 and N // tn == 1 and M >= 16 and (M // 2) % 8 == 0:
        tm = M // 2
    grid = (M // tm, N // tn, K // tk)

    xb = x.astype(jnp.bfloat16)            # bf16 MXU operands, f32 accumulate
    wb = w.astype(jnp.bfloat16)
    b2 = b.reshape(1, N).astype(jnp.float32)

    out_itemsize = jnp.dtype(out_dtype).itemsize
    bytes_accessed = M * K * 2 + K * N * 2 + N * 4 + M * N * out_itemsize
    transcendentals = M * N if act == "gelu" else 0

    return pl.pallas_call(
        functools.partial(_mm_kernel, act=act),
        grid=grid,
        in_specs=[pl.BlockSpec((tm, tk), lambda i, j, k: (i, k)),
                  pl.BlockSpec((tk, tn), lambda i, j, k: (k, j)),
                  pl.BlockSpec((1, tn), lambda i, j, k: (0, j))],
        out_specs=pl.BlockSpec((tm, tn), lambda i, j, k: (i, j)),
        out_shape=jax.ShapeDtypeStruct((M, N), out_dtype),
        scratch_shapes=[pltpu.VMEM((tm, tn), jnp.float32)],
        compiler_params=pltpu.CompilerParams(
            dimension_semantics=("parallel", "parallel", "arbitrary"),
            vmem_limit_bytes=VMEM_LIMIT),
        cost_estimate=pl.CostEstimate(flops=2 * M * N * K,
                                      transcendentals=transcendentals,
                                      bytes_accessed=bytes_accessed),
    )(xb, wb, b2)


# ------------------- fused attention block: LN1 + QKV + MHA + proj + residual -------------------
def _attn_block_kernel(tok_ref, g_ref, bln_ref, qkvw_ref, qkvb_ref, pw_ref, pb_ref,
                       o_ref, *, nheads, hd, seq_len):
    # TODO(synk): at real sequence length (T=577) tile the KV axis flash-style (256-wide
    # key tiles, 128-row query tiles) instead of materializing the full (T, T) scores.
    tok = tok_ref[0].astype(jnp.float32)                       # (T_pad, D), residual stream
    mu = jnp.mean(tok, axis=-1, keepdims=True)
    var = jnp.mean(jnp.square(tok - mu), axis=-1, keepdims=True)
    xn = ((tok - mu) * jax.lax.rsqrt(var + EPS) * g_ref[...]
          + bln_ref[...]).astype(jnp.bfloat16)

    # QKV projection (attention scale is pre-folded into the Q third of the weights).
    qkv = (jnp.dot(xn, qkvw_ref[...], preferred_element_type=jnp.float32)
           + qkvb_ref[...]).astype(jnp.bfloat16)               # (T_pad, 3D)

    d = nheads * hd
    t_pad = tok.shape[0]
    # mask padded key columns (seq_len..t_pad-1); padded *query* rows carry garbage but
    # only the cls row is ever read downstream.
    kmask = jax.lax.broadcasted_iota(jnp.int32, (t_pad, t_pad), 1) < seq_len

    # proj bias + residual seed the accumulator; each head's output is folded directly
    # into it through the matching row-slice of proj_w (no list / lane concatenate).
    acc = tok + pb_ref[...].astype(jnp.float32)
    for h in range(nheads):                                    # static unroll over heads
        q = qkv[:, h * hd:(h + 1) * hd]
        k = qkv[:, d + h * hd: d + (h + 1) * hd]
        v = qkv[:, 2 * d + h * hd: 2 * d + (h + 1) * hd]
        s = jax.lax.dot_general(q, k, (((1,), (1,)), ((), ())),   # q @ k^T, no transpose
                                preferred_element_type=jnp.float32)
        s = jnp.where(kmask, s, -1e30)
        s = s - jnp.max(s, axis=-1, keepdims=True)
        p = jnp.exp(s)
        inv_l = pl.reciprocal(jnp.sum(p, axis=-1, keepdims=True), approx=True)
        o_h = (jnp.dot(p.astype(jnp.bfloat16), v,
                       preferred_element_type=jnp.float32) * inv_l).astype(jnp.bfloat16)
        acc += jnp.dot(o_h, pw_ref[h * hd:(h + 1) * hd, :],
                       preferred_element_type=jnp.float32)
    o_ref[0] = acc.astype(o_ref.dtype)


def attn_block(tok, blk, seq_len):
    B2, T_pad, d = tok.shape
    flops = B2 * (2 * T_pad * d * 3 * d + 4 * NH * T_pad * T_pad * HD + 2 * T_pad * d * d)
    bytes_accessed = (2 * B2 * T_pad * d * 2                      # tok in + out (bf16)
                      + B2 * (d * 3 * d * 2 + d * d * 2 + 3 * d * 4 + 3 * d * 4))
    return pl.pallas_call(
        functools.partial(_attn_block_kernel, nheads=NH, hd=HD, seq_len=seq_len),
        grid=(B2,),
        in_specs=[pl.BlockSpec((1, T_pad, d), lambda b: (b, 0, 0)),
                  pl.BlockSpec((1, d), lambda b: (0, 0)),
                  pl.BlockSpec((1, d), lambda b: (0, 0)),
                  pl.BlockSpec((d, 3 * d), lambda b: (0, 0)),
                  pl.BlockSpec((1, 3 * d), lambda b: (0, 0)),
                  pl.BlockSpec((d, d), lambda b: (0, 0)),
                  pl.BlockSpec((1, d), lambda b: (0, 0))],
        out_specs=pl.BlockSpec((1, T_pad, d), lambda b: (b, 0, 0)),
        out_shape=jax.ShapeDtypeStruct((B2, T_pad, d), jnp.bfloat16),
        compiler_params=pltpu.CompilerParams(
            dimension_semantics=("parallel",),
            vmem_limit_bytes=VMEM_LIMIT),
        cost_estimate=pl.CostEstimate(flops=flops,
                                      transcendentals=B2 * NH * T_pad * T_pad,
                                      bytes_accessed=bytes_accessed),
    )(tok, blk["ln1_g"], blk["ln1_b"], blk["qkv_w"], blk["qkv_b"],
      blk["proj_w"], blk["proj_b"])


# ------------------- fused MLP block: LN2 + fc1 + GELU + fc2 + residual -------------------
def _mlp_block_kernel(tok_ref, g_ref, bln_ref, w1_ref, b1_ref, w2_ref, b2_ref, o_ref):
    tok = tok_ref[0].astype(jnp.float32)                       # (T_pad, D)
    mu = jnp.mean(tok, axis=-1, keepdims=True)
    var = jnp.mean(jnp.square(tok - mu), axis=-1, keepdims=True)
    xn = ((tok - mu) * jax.lax.rsqrt(var + EPS) * g_ref[...]
          + bln_ref[...]).astype(jnp.bfloat16)
    h = jnp.dot(xn, w1_ref[...], preferred_element_type=jnp.float32) + b1_ref[...]
    h = _apply_act(h, "gelu").astype(jnp.bfloat16)             # (T_pad, MLP)
    y = jnp.dot(h, w2_ref[...], preferred_element_type=jnp.float32) + b2_ref[...]
    o_ref[0] = (y + tok).astype(o_ref.dtype)


def mlp_block(tok, blk):
    B2, T_pad, d = tok.shape
    flops = B2 * (4 * T_pad * d * MLP)
    bytes_accessed = (2 * B2 * T_pad * d * 2
                      + B2 * (2 * d * MLP * 2 + MLP * 4 + d * 4))
    return pl.pallas_call(
        _mlp_block_kernel,
        grid=(B2,),
        in_specs=[pl.BlockSpec((1, T_pad, d), lambda b: (b, 0, 0)),
                  pl.BlockSpec((1, d), lambda b: (0, 0)),
                  pl.BlockSpec((1, d), lambda b: (0, 0)),
                  pl.BlockSpec((d, MLP), lambda b: (0, 0)),
                  pl.BlockSpec((1, MLP), lambda b: (0, 0)),
                  pl.BlockSpec((MLP, d), lambda b: (0, 0)),
                  pl.BlockSpec((1, d), lambda b: (0, 0))],
        out_specs=pl.BlockSpec((1, T_pad, d), lambda b: (b, 0, 0)),
        out_shape=jax.ShapeDtypeStruct((B2, T_pad, d), jnp.bfloat16),
        compiler_params=pltpu.CompilerParams(
            dimension_semantics=("parallel",),
            vmem_limit_bytes=VMEM_LIMIT),
        cost_estimate=pl.CostEstimate(flops=flops,
                                      transcendentals=B2 * T_pad * MLP,
                                      bytes_accessed=bytes_accessed),
    )(tok, blk["ln2_g"], blk["ln2_b"], blk["fc1_w"], blk["fc1_b"],
      blk["fc2_w"], blk["fc2_b"])


# ------------------- fused head: final LN + diff + fc + ReLU + average + fc2 -------------------
def _head_kernel(f1_ref, f2_ref, g_ref, bg_ref, fcw_ref, fcb_ref, fc2w_ref, fc2b_ref, o_ref):
    def ln(x):
        x = x.astype(jnp.float32)
        mu = jnp.mean(x, axis=-1, keepdims=True)
        var = jnp.mean(jnp.square(x - mu), axis=-1, keepdims=True)
        return (x - mu) * jax.lax.rsqrt(var + EPS) * g_ref[...] + bg_ref[...]

    diff = ln(f1_ref[0]) - ln(f2_ref[0])                       # f1 - f2, (B, D)
    z = jnp.dot(diff.astype(jnp.bfloat16), fcw_ref[...],
                preferred_element_type=jnp.float32)
    fb = fcb_ref[...].astype(jnp.float32)
    # fc(f2 - f1) = -z + b, so both ReLU branches share one matmul.
    h = 0.5 * (jnp.maximum(z + fb, 0.0) + jnp.maximum(fb - z, 0.0))
    y = (jnp.dot(h.astype(jnp.bfloat16), fc2w_ref[...],
                 preferred_element_type=jnp.float32) + fc2b_ref[...])
    o_ref[...] = y.astype(o_ref.dtype)


def head_forward(cls_all, params, half):
    d = cls_all.shape[1]
    cls3 = cls_all.reshape(2, half, d)          # [0] = image-1 features, [1] = image-2
    out = pl.pallas_call(
        _head_kernel,
        grid=(1,),
        in_specs=[pl.BlockSpec((1, half, d), lambda i: (0, 0, 0)),
                  pl.BlockSpec((1, half, d), lambda i: (1, 0, 0)),
                  pl.BlockSpec((1, d), lambda i: (0, 0)),
                  pl.BlockSpec((1, d), lambda i: (0, 0)),
                  pl.BlockSpec((d, HID_PAD), lambda i: (0, 0)),
                  pl.BlockSpec((1, HID_PAD), lambda i: (0, 0)),
                  pl.BlockSpec((HID_PAD, OUT_PAD), lambda i: (0, 0)),
                  pl.BlockSpec((1, OUT_PAD), lambda i: (0, 0))],
        out_specs=pl.BlockSpec((half, OUT_PAD), lambda i: (0, 0)),
        out_shape=jax.ShapeDtypeStruct((half, OUT_PAD), jnp.float32),
        compiler_params=pltpu.CompilerParams(
            dimension_semantics=("arbitrary",),
            vmem_limit_bytes=VMEM_LIMIT),
    )(cls3, cls3, params["norm_g"], params["norm_b"],
      params["fc_w"], params["fc_b"], params["fc2_w"], params["fc2_b"])
    return out[:, :2]


# ---------------------------------- parameters ----------------------------------
def init_params(key):
    keys = iter(jax.random.split(key, 64))

    def nrm(shape, std=0.02):
        return std * jax.random.normal(next(keys), shape, dtype=jnp.float32)

    zeros = lambda s: jnp.zeros(s, jnp.float32)
    ones = lambda s: jnp.ones(s, jnp.float32)

    T = (IMG // PATCH) ** 2 + 1
    scale = HD ** -0.5
    params = {
        "patch_w": nrm((C * PATCH * PATCH, D)),   # Conv2d(3, D, 16, 16) flattened
        "patch_b": zeros((D,)),
        "cls": nrm((1, 1, D)),
        "pos": nrm((1, T, D)),
        "norm_g": ones((1, D)),
        "norm_b": zeros((1, D)),
        "blocks": [],
        # diff-attn-pool head: hidden padded 100 -> 128 and fc2 output padded to 128
        # lanes with zeros (exactly equivalent; padding sliced off in the wrapper).
        "fc_w": jnp.pad(nrm((D, HIDDEN)),
                        ((0, 0), (0, HID_PAD - HIDDEN))).astype(jnp.bfloat16),
        "fc_b": jnp.pad(zeros((1, HIDDEN)), ((0, 0), (0, HID_PAD - HIDDEN))),
        "fc2_w": jnp.pad(nrm((HIDDEN, 2)),
                         ((0, HID_PAD - HIDDEN), (0, OUT_PAD - 2))).astype(jnp.bfloat16),
        "fc2_b": jnp.pad(zeros((1, 2)), ((0, 0), (0, OUT_PAD - 2))),
    }
    for _ in range(DEPTH):
        qkv_w = nrm((D, 3 * D))
        qkv_b = zeros((3 * D,))
        # fold the attention scale (hd**-0.5) into the Q third of qkv (host side,
        # zero runtime cost; kernel applies no per-head scale).
        qkv_w = qkv_w.at[:, :D].multiply(scale)
        qkv_b = qkv_b.at[:D].multiply(scale)
        params["blocks"].append({
            "ln1_g": ones((1, D)), "ln1_b": zeros((1, D)),
            "qkv_w": qkv_w.astype(jnp.bfloat16), "qkv_b": qkv_b.reshape(1, 3 * D),
            "proj_w": nrm((D, D)).astype(jnp.bfloat16), "proj_b": zeros((1, D)),
            "ln2_g": ones((1, D)), "ln2_b": zeros((1, D)),
            "fc1_w": nrm((D, MLP)).astype(jnp.bfloat16), "fc1_b": zeros((1, MLP)),
            "fc2_w": nrm((MLP, D)).astype(jnp.bfloat16), "fc2_b": zeros((1, D)),
        })
    return params


# ---------------------------------- ViT backbone (batched over both images) ----------------------------------
def vit_backbone(x, params):
    B_, C_, H_, W_ = x.shape
    P = PATCH
    nh, nw = H_ // P, W_ // P
    N = nh * nw
    T = N + 1
    T_pad = ((T + 7) // 8) * 8        # sublane-aligned token count

    # patch embedding: Conv2d(k=16, s=16) == patchify + matmul (features ordered (C, Ph, Pw))
    xp = (x.reshape(B_, C_, nh, P, nw, P)
           .transpose(0, 2, 4, 1, 3, 5)
           .reshape(B_ * N, C_ * P * P))
    tok = matmul_bias(xp, params["patch_w"], params["patch_b"]).reshape(B_, N, D)

    # prepend cls token, add positional embedding (eval: dropout is identity), pad to T_pad
    cls = jnp.broadcast_to(params["cls"], (B_, 1, D))
    tok = jnp.concatenate([cls, tok], axis=1) + params["pos"]          # (B_, T, D), f32
    tok = jnp.pad(tok, ((0, 0), (0, T_pad - T), (0, 0)))
    tok = tok.astype(jnp.bfloat16)                                     # bf16 residual stream

    for blk in params["blocks"]:
        tok = attn_block(tok, blk, seq_len=T)   # LN1 + QKV + MHA + proj + residual
        tok = mlp_block(tok, blk)               # LN2 + fc1 + GELU + fc2 + residual

    # num_classes=0 -> head Identity, global_pool='token' -> cls embedding.
    # The final LayerNorm is per-token and only the cls row is read, so it is fused
    # into the head kernel; here we just return the cls rows.
    return tok[:, 0, :]                                                # (B_, D) bf16


# ---------------------------------- full module forward ----------------------------------
def model_forward(x1, x2, params):
    half = x1.shape[0]
    # one batched siamese pass: both image streams share every kernel call
    x = jnp.concatenate([x1, x2], axis=0)          # (2B, C, H, W)
    cls_all = vit_backbone(x, params)              # (2B, D)
    return head_forward(cls_all, params, half)     # (B, 2)


if __name__ == "__main__":
    key = jax.random.PRNGKey(0)
    pkey, k1, k2 = jax.random.split(key, 3)
    params = init_params(pkey)
    x1 = jax.random.normal(k1, (B, C, IMG, IMG), dtype=jnp.float32)
    x2 = jax.random.normal(k2, (B, C, IMG, IMG), dtype=jnp.float32)

    out = jax.jit(model_forward)(x1, x2, params)
    out = jax.block_until_ready(out)
    assert out.shape == (B, 2), out.shape
    assert jnp.all(jnp.isfinite(out))
    print("KERNEL_OK")
</pallas_src>

<mosaic_0001>
module attributes {stable_mosaic.version = 11 : i64} {
  func.func @_mm_kernel(%arg0: i32, %arg1: i32, %arg2: i32, %arg3: memref<8x256xbf16, #tpu.memory_space<vmem>>, %arg4: memref<256x64xbf16, #tpu.memory_space<vmem>>, %arg5: memref<1x64xf32, #tpu.memory_space<vmem>>, %arg6: memref<8x64xf32, #tpu.memory_space<vmem>>, %arg7: memref<8x64xf32, #tpu.memory_space<vmem>>) attributes {dimension_semantics = [#tpu.dimension_semantics<parallel>, #tpu.dimension_semantics<parallel>, #tpu.dimension_semantics<arbitrary>], iteration_bounds = array<i64: 2, 1, 3>, scalar_prefetch = 0 : i64, scratch_operands = 1 : i64, tpu.core_type = #tpu.core_type<tc>, window_params = [{transform_indices = @transform_0, window_bounds = array<i64: 8, 256>}, {transform_indices = @transform_1, window_bounds = array<i64: 256, 64>}, {transform_indices = @transform_2, window_bounds = array<i64: 1, 64>}, {transform_indices = @transform_3, window_bounds = array<i64: 8, 64>}]} {
    %c0_i32 = arith.constant 0 : i32
    %0 = arith.cmpi eq, %arg2, %c0_i32 : i32
    %1 = arith.extui %0 : i1 to i32
    %c0_i32_0 = arith.constant 0 : i32
    %2 = arith.cmpi ne, %1, %c0_i32_0 : i32
    scf.if %2 {
      %cst_9 = arith.constant 0.000000e+00 : f32
      %12 = vector.broadcast %cst_9 : f32 to vector<8x64xf32>
      %c0_10 = arith.constant 0 : index
      %c0_11 = arith.constant 0 : index
      %13 = vector.load %arg7[%c0_10, %c0_11] : memref<8x64xf32, #tpu.memory_space<vmem>>, vector<8x64xf32>
      tpu.vector_store %arg7[%c0_10, %c0_11], %12 {strides = array<i32>} : memref<8x64xf32, #tpu.memory_space<vmem>>, vector<8x64xf32>,
    } else {
    }
    %c0 = arith.constant 0 : index
    %c0_1 = arith.constant 0 : index
    %3 = vector.load %arg7[%c0, %c0_1] : memref<8x64xf32, #tpu.memory_space<vmem>>, vector<8x64xf32>
    %c0_2 = arith.constant 0 : index
    %c0_3 = arith.constant 0 : index
    %4 = vector.load %arg3[%c0_2, %c0_3] : memref<8x256xbf16, #tpu.memory_space<vmem>>, vector<8x256xbf16>
    %c0_4 = arith.constant 0 : index
    %c0_5 = arith.constant 0 : index
    %5 = vector.load %arg4[%c0_4, %c0_5] : memref<256x64xbf16, #tpu.memory_space<vmem>>, vector<256x64xbf16>
    %cst = arith.constant dense<0.000000e+00> : vector<8x64xf32>
    %6 = tpu.matmul %4, %5, %cst {dimension_numbers = #tpu.dot_dimension_numbers<[1], [0], [0], [1], [0, 0, 1, 1], [], []>} : vector<8x256xbf16>, vector<256x64xbf16>, vector<8x64xf32> -> vector<8x64xf32>
    %7 = arith.addf %3, %6 : vector<8x64xf32>
    %c0_6 = arith.constant 0 : index
    %c0_7 = arith.constant 0 : index
    %8 = vector.load %arg7[%c0_6, %c0_7] : memref<8x64xf32, #tpu.memory_space<vmem>>, vector<8x64xf32>
    tpu.vector_store %arg7[%c0_6, %c0_7], %7 {strides = array<i32>} : memref<8x64xf32, #tpu.memory_space<vmem>>, vector<8x64xf32>,
    %c2_i32 = arith.constant 2 : i32
    %9 = arith.cmpi eq, %arg2, %c2_i32 : i32
    %10 = arith.extui %9 : i1 to i32
    %c0_i32_8 = arith.constant 0 : i32
    %11 = arith.cmpi ne, %10, %c0_i32_8 : i32
    scf.if %11 {
      %c0_9 = arith.constant 0 : index
      %c0_10 = arith.constant 0 : index
      %12 = vector.load %arg7[%c0_9, %c0_10] : memref<8x64xf32, #tpu.memory_space<vmem>>, vector<8x64xf32>
      %c0_11 = arith.constant 0 : index
      %c0_12 = arith.constant 0 : index
      %13 = vector.load %arg5[%c0_11, %c0_12] : memref<1x64xf32, #tpu.memory_space<vmem>>, vector<1x64xf32>
      %14 = vector.broadcast %13 : vector<1x64xf32> to vector<8x64xf32>
      %15 = arith.addf %12, %14 : vector<8x64xf32>
      %c0_13 = arith.constant 0 : index
      %c0_14 = arith.constant 0 : index
      %16 = vector.load %arg6[%c0_13, %c0_14] : memref<8x64xf32, #tpu.memory_space<vmem>>, vector<8x64xf32>
      tpu.vector_store %arg6[%c0_13, %c0_14], %15 {strides = array<i32>} : memref<8x64xf32, #tpu.memory_space<vmem>>, vector<8x64xf32>,
    } else {
    }
    return
  }
  func.func @transform_0(%arg0: i32, %arg1: i32, %arg2: i32) -> (i32, i32) {
    %c0_i32 = arith.constant 0 : i32
    return %arg0, %arg2 : i32, i32
  }
  func.func @transform_1(%arg0: i32, %arg1: i32, %arg2: i32) -> (i32, i32) {
    %c0_i32 = arith.constant 0 : i32
    return %arg2, %arg1 : i32, i32
  }
  func.func @transform_2(%arg0: i32, %arg1: i32, %arg2: i32) -> (i32, i32) {
    %c0_i32 = arith.constant 0 : i32
    %c0_i32_0 = arith.constant 0 : i32
    return %c0_i32, %arg1 : i32, i32
  }
  func.func @transform_3(%arg0: i32, %arg1: i32, %arg2: i32) -> (i32, i32) {
    %c0_i32 = arith.constant 0 : i32
    return %arg0, %arg1 : i32, i32
  }
}

module attributes {stable_mosaic.version = 11 : i64} {
  func.func @_attn_block_kernel(%arg0: i32, %arg1: memref<1x8x64xbf16, #tpu.memory_space<vmem>>, %arg2: memref<1x64xf32, #tpu.memory_space<vmem>>, %arg3: memref<1x64xf32, #tpu.memory_space<vmem>>, %arg4: memref<64x192xbf16, #tpu.memory_space<vmem>>, %arg5: memref<1x192xf32, #tpu.memory_space<vmem>>, %arg6: memref<64x64xbf16, #tpu.memory_space<vmem>>, %arg7: memref<1x64xf32, #tpu.memory_space<vmem>>, %arg8: memref<1x8x64xbf16, #tpu.memory_space<vmem>>) attributes {dimension_semantics = [#tpu.dimension_semantics<parallel>], iteration_bounds = array<i64: 4>, scalar_prefetch = 0 : i64, scratch_operands = 0 : i64, tpu.core_type = #tpu.core_type<tc>, window_params = [{transform_indices = @transform_0, window_bounds = array<i64: 1, 8, 64>}, {pipeline_mode = #tpu.pipeline_mode<synchronous>, transform_indices = @transform_1, window_bounds = array<i64: 1, 64>}, {pipeline_mode = #tpu.pipeline_mode<synchronous>, transform_indices = @transform_2, window_bounds = array<i64: 1, 64>}, {pipeline_mode = #tpu.pipeline_mode<synchronous>, transform_indices = @transform_3, window_bounds = array<i64: 64, 192>}, {pipeline_mode = #tpu.pipeline_mode<synchronous>, transform_indices = @transform_4, window_bounds = array<i64: 1, 192>}, {pipeline_mode = #tpu.pipeline_mode<synchronous>, transform_indices = @transform_5, window_bounds = array<i64: 64, 64>}, {pipeline_mode = #tpu.pipeline_mode<synchronous>, transform_indices = @transform_6, window_bounds = array<i64: 1, 64>}, {transform_indices = @transform_7, window_bounds = array<i64: 1, 8, 64>}]} {
    %c0 = arith.constant 0 : index
    %c0_0 = arith.constant 0 : index
    %c0_1 = arith.constant 0 : index
    %0 = vector.load %arg1[%c0, %c0_0, %c0_1] : memref<1x8x64xbf16, #tpu.memory_space<vmem>>, vector<1x8x64xbf16>
    %1 = vector.shape_cast %0 : vector<1x8x64xbf16> to vector<8x64xbf16>
    %2 = arith.extf %1 : vector<8x64xbf16> to vector<8x64xf32>
    %cst = arith.constant dense<0.000000e+00> : vector<8xf32>
    %3 = vector.multi_reduction <add>, %2, %cst [1] : vector<8x64xf32> to vector<8xf32>
    %4 = vector.shape_cast %3 : vector<8xf32> to vector<8x1xf32>
    %cst_2 = arith.constant 6.400000e+01 : f32
    %5 = vector.broadcast %cst_2 : f32 to vector<8x1xf32>
    %6 = arith.divf %4, %5 : vector<8x1xf32>
    %7 = vector.broadcast %6 : vector<8x1xf32> to vector<8x64xf32>
    %8 = arith.subf %2, %7 : vector<8x64xf32>
    %9 = arith.mulf %8, %8 : vector<8x64xf32>
    %cst_3 = arith.constant dense<0.000000e+00> : vector<8xf32>
    %10 = vector.multi_reduction <add>, %9, %cst_3 [1] : vector<8x64xf32> to vector<8xf32>
    %11 = vector.shape_cast %10 : vector<8xf32> to vector<8x1xf32>
    %cst_4 = arith.constant 6.400000e+01 : f32
    %12 = vector.broadcast %cst_4 : f32 to vector<8x1xf32>
    %13 = arith.divf %11, %12 : vector<8x1xf32>
    %14 = vector.broadcast %6 : vector<8x1xf32> to vector<8x64xf32>
    %15 = arith.subf %2, %14 : vector<8x64xf32>
    %cst_5 = arith.constant 9.99999997E-7 : f32
    %16 = vector.broadcast %cst_5 : f32 to vector<8x1xf32>
    %17 = arith.addf %13, %16 : vector<8x1xf32>
    %18 = math.rsqrt %17 : vector<8x1xf32>
    %19 = vector.broadcast %18 : vector<8x1xf32> to vector<8x64xf32>
    %20 = arith.mulf %15, %19 : vector<8x64xf32>
    %c0_6 = arith.constant 0 : index
    %c0_7 = arith.constant 0 : index
    %21 = vector.load %arg2[%c0_6, %c0_7] : memref<1x64xf32, #tpu.memory_space<vmem>>, vector<1x64xf32>
    %22 = vector.broadcast %21 : vector<1x64xf32> to vector<8x64xf32>
    %23 = arith.mulf %20, %22 : vector<8x64xf32>
    %c0_8 = arith.constant 0 : index
    %c0_9 = arith.constant 0 : index
    %24 = vector.load %arg3[%c0_8, %c0_9] : memref<1x64xf32, #tpu.memory_space<vmem>>, vector<1x64xf32>
    %25 = vector.broadcast %24 : vector<1x64xf32> to vector<8x64xf32>
    %26 = arith.addf %23, %25 : vector<8x64xf32>
    %27 = arith.truncf %26 : vector<8x64xf32> to vector<8x64xbf16>
    %c0_10 = arith.constant 0 : index
    %c0_11 = arith.constant 0 : index
    %28 = vector.load %arg4[%c0_10, %c0_11] : memref<64x192xbf16, #tpu.memory_space<vmem>>, vector<64x192xbf16>
    %cst_12 = arith.constant dense<0.000000e+00> : vector<8x192xf32>
    %29 = tpu.matmul %27, %28, %cst_12 {dimension_numbers = #tpu.dot_dimension_numbers<[1], [0], [0], [1], [0, 0, 1, 1], [], []>} : vector<8x64xbf16>, vector<64x192xbf16>, vector<8x192xf32> -> vector<8x192xf32>
    %c0_13 = arith.constant 0 : index
    %c0_14 = arith.constant 0 : index
    %30 = vector.load %arg5[%c0_13, %c0_14] : memref<1x192xf32, #tpu.memory_space<vmem>>, vector<1x192xf32>
    %31 = vector.broadcast %30 : vector<1x192xf32> to vector<8x192xf32>
    %32 = arith.addf %29, %31 : vector<8x192xf32>
    %33 = arith.truncf %32 : vector<8x192xf32> to vector<8x192xbf16>
    %34 = tpu.iota {dimensions = array<i32: 1>} : vector<8x8xi32>
    %c5_i32 = arith.constant 5 : i32
    %35 = vector.broadcast %c5_i32 : i32 to vector<8x8xi32>
    %36 = arith.cmpi slt, %34, %35 : vector<8x8xi32>
    %c0_15 = arith.constant 0 : index
    %c0_16 = arith.constant 0 : index
    %37 = vector.load %arg7[%c0_15, %c0_16] : memref<1x64xf32, #tpu.memory_space<vmem>>, vector<1x64xf32>
    %38 = vector.broadcast %37 : vector<1x64xf32> to vector<8x64xf32>
    %39 = arith.addf %2, %38 : vector<8x64xf32>
    %40 = vector.extract_strided_slice %33 {offsets = [0, 0], sizes = [8, 16], strides = [1, 1]} : vector<8x192xbf16> to vector<8x16xbf16>
    %41 = vector.extract_strided_slice %33 {offsets = [0, 64], sizes = [8, 16], strides = [1, 1]} : vector<8x192xbf16> to vector<8x16xbf16>
    %42 = vector.extract_strided_slice %33 {offsets = [0, 128], sizes = [8, 16], strides = [1, 1]} : vector<8x192xbf16> to vector<8x16xbf16>
    %cst_17 = arith.constant dense<0.000000e+00> : vector<8x8xf32>
    %43 = tpu.matmul %40, %41, %cst_17 {dimension_numbers = #tpu.dot_dimension_numbers<[1], [1], [0], [0], [0, 0, 1, 0], [], []>} : vector<8x16xbf16>, vector<8x16xbf16>, vector<8x8xf32> -> vector<8x8xf32>
    %cst_18 = arith.constant -1.000000e+30 : f32
    %44 = vector.broadcast %cst_18 : f32 to vector<8x8xf32>
    %45 = arith.select %36, %43, %44 : vector<8x8xi1>, vector<8x8xf32>
    %cst_19 = arith.constant dense<0xFF800000> : vector<8xf32>
    %46 = vector.multi_reduction <maximumf>, %45, %cst_19 [1] : vector<8x8xf32> to vector<8xf32>
    %47 = vector.shape_cast %46 : vector<8xf32> to vector<8x1xf32>
    %48 = vector.broadcast %47 : vector<8x1xf32> to vector<8x8xf32>
    %49 = arith.subf %45, %48 : vector<8x8xf32>
    %50 = math.exp %49 : vector<8x8xf32>
    %cst_20 = arith.constant dense<0.000000e+00> : vector<8xf32>
    %51 = vector.multi_reduction <add>, %50, %cst_20 [1] : vector<8x8xf32> to vector<8xf32>
    %52 = vector.shape_cast %51 : vector<8xf32> to vector<8x1xf32>
    %53 = tpu.reciprocal %52 {approx = true} : vector<8x1xf32> -> vector<8x1xf32>
    %54 = arith.truncf %50 : vector<8x8xf32> to vector<8x8xbf16>
    %cst_21 = arith.constant dense<0.000000e+00> : vector<8x16xf32>
    %55 = tpu.matmul %54, %42, %cst_21 {dimension_numbers = #tpu.dot_dimension_numbers<[1], [0], [0], [1], [0, 0, 1, 1], [], []>} : vector<8x8xbf16>, vector<8x16xbf16>, vector<8x16xf32> -> vector<8x16xf32>
    %56 = vector.broadcast %53 : vector<8x1xf32> to vector<8x16xf32>
    %57 = arith.mulf %55, %56 : vector<8x16xf32>
    %58 = arith.truncf %57 : vector<8x16xf32> to vector<8x16xbf16>
    %c0_22 = arith.constant 0 : index
    %c0_23 = arith.constant 0 : index
    %59 = vector.load %arg6[%c0_22, %c0_23] : memref<64x64xbf16, #tpu.memory_space<vmem>>, vector<16x64xbf16>
    %cst_24 = arith.constant dense<0.000000e+00> : vector<8x64xf32>
    %60 = tpu.matmul %58, %59, %cst_24 {dimension_numbers = #tpu.dot_dimension_numbers<[1], [0], [0], [1], [0, 0, 1, 1], [], []>} : vector<8x16xbf16>, vector<16x64xbf16>, vector<8x64xf32> -> vector<8x64xf32>
    %61 = arith.addf %39, %60 : vector<8x64xf32>
    %62 = vector.extract_strided_slice %33 {offsets = [0, 16], sizes = [8, 16], strides = [1, 1]} : vector<8x192xbf16> to vector<8x16xbf16>
    %63 = vector.extract_strided_slice %33 {offsets = [0, 80], sizes = [8, 16], strides = [1, 1]} : vector<8x192xbf16> to vector<8x16xbf16>
    %64 = vector.extract_strided_slice %33 {offsets = [0, 144], sizes = [8, 16], strides = [1, 1]} : vector<8x192xbf16> to vector<8x16xbf16>
    %cst_25 = arith.constant dense<0.000000e+00> : vector<8x8xf32>
    %65 = tpu.matmul %62, %63, %cst_25 {dimension_numbers = #tpu.dot_dimension_numbers<[1], [1], [0], [0], [0, 0, 1, 0], [], []>} : vector<8x16xbf16>, vector<8x16xbf16>, vector<8x8xf32> -> vector<8x8xf32>
    %cst_26 = arith.constant -1.000000e+30 : f32
    %66 = vector.broadcast %cst_26 : f32 to vector<8x8xf32>
    %67 = arith.select %36, %65, %66 : vector<8x8xi1>, vector<8x8xf32>
    %cst_27 = arith.constant dense<0xFF800000> : vector<8xf32>
    %68 = vector.multi_reduction <maximumf>, %67, %cst_27 [1] : vector<8x8xf32> to vector<8xf32>
    %69 = vector.shape_cast %68 : vector<8xf32> to vector<8x1xf32>
    %70 = vector.broadcast %69 : vector<8x1xf32> to vector<8x8xf32>
    %71 = arith.subf %67, %70 : vector<8x8xf32>
    %72 = math.exp %71 : vector<8x8xf32>
    %cst_28 = arith.constant dense<0.000000e+00> : vector<8xf32>
    %73 = vector.multi_reduction <add>, %72, %cst_28 [1] : vector<8x8xf32> to vector<8xf32>
    %74 = vector.shape_cast %73 : vector<8xf32> to vector<8x1xf32>
    %75 = tpu.reciprocal %74 {approx = true} : vector<8x1xf32> -> vector<8x1xf32>
    %76 = arith.truncf %72 : vector<8x8xf32> to vector<8x8xbf16>
    %cst_29 = arith.constant dense<0.000000e+00> : vector<8x16xf32>
    %77 = tpu.matmul %76, %64, %cst_29 {dimension_numbers = #tpu.dot_dimension_numbers<[1], [0], [0], [1], [0, 0, 1, 1], [], []>} : vector<8x8xbf16>, vector<8x16xbf16>, vector<8x16xf32> -> vector<8x16xf32>
    %78 = vector.broadcast %75 : vector<8x1xf32> to vector<8x16xf32>
    %79 = arith.mulf %77, %78 : vector<8x16xf32>
    %80 = arith.truncf %79 : vector<8x16xf32> to vector<8x16xbf16>
    %c16 = arith.constant 16 : index
    %c0_30 = arith.constant 0 : index
    %81 = vector.load %arg6[%c16, %c0_30] : memref<64x64xbf16, #tpu.memory_space<vmem>>, vector<16x64xbf16>
    %cst_31 = arith.constant dense<0.000000e+00> : vector<8x64xf32>
    %82 = tpu.matmul %80, %81, %cst_31 {dimension_numbers = #tpu.dot_dimension_numbers<[1], [0], [0], [1], [0, 0, 1, 1], [], []>} : vector<8x16xbf16>, vector<16x64xbf16>, vector<8x64xf32> -> vector<8x64xf32>
    %83 = arith.addf %61, %82 : vector<8x64xf32>
    %84 = vector.extract_strided_slice %33 {offsets = [0, 32], sizes = [8, 16], strides = [1, 1]} : vector<8x192xbf16> to vector<8x16xbf16>
    %85 = vector.extract_strided_slice %33 {offsets = [0, 96], sizes = [8, 16], strides = [1, 1]} : vector<8x192xbf16> to vector<8x16xbf16>
    %86 = vector.extract_strided_slice %33 {offsets = [0, 160], sizes = [8, 16], strides = [1, 1]} : vector<8x192xbf16> to vector<8x16xbf16>
    %cst_32 = arith.constant dense<0.000000e+00> : vector<8x8xf32>
    %87 = tpu.matmul %84, %85, %cst_32 {dimension_numbers = #tpu.dot_dimension_numbers<[1], [1], [0], [0], [0, 0, 1, 0], [], []>} : vector<8x16xbf16>, vector<8x16xbf16>, vector<8x8xf32> -> vector<8x8xf32>
    %cst_33 = arith.constant -1.000000e+30 : f32
    %88 = vector.broadcast %cst_33 : f32 to vector<8x8xf32>
    %89 = arith.select %36, %87, %88 : vector<8x8xi1>, vector<8x8xf32>
    %cst_34 = arith.constant dense<0xFF800000> : vector<8xf32>
    %90 = vector.multi_reduction <maximumf>, %89, %cst_34 [1] : vector<8x8xf32> to vector<8xf32>
    %91 = vector.shape_cast %90 : vector<8xf32> to vector<8x1xf32>
    %92 = vector.broadcast %91 : vector<8x1xf32> to vector<8x8xf32>
    %93 = arith.subf %89, %92 : vector<8x8xf32>
    %94 = math.exp %93 : vector<8x8xf32>
    %cst_35 = arith.constant dense<0.000000e+00> : vector<8xf32>
    %95 = vector.multi_reduction <add>, %94, %cst_35 [1] : vector<8x8xf32> to vector<8xf32>
    %96 = vector.shape_cast %95 : vector<8xf32> to vector<8x1xf32>
    %97 = tpu.reciprocal %96 {approx = true} : vector<8x1xf32> -> vector<8x1xf32>
    %98 = arith.truncf %94 : vector<8x8xf32> to vector<8x8xbf16>
    %cst_36 = arith.constant dense<0.000000e+00> : vector<8x16xf32>
    %99 = tpu.matmul %98, %86, %cst_36 {dimension_numbers = #tpu.dot_dimension_numbers<[1], [0], [0], [1], [0, 0, 1, 1], [], []>} : vector<8x8xbf16>, vector<8x16xbf16>, vector<8x16xf32> -> vector<8x16xf32>
    %100 = vector.broadcast %97 : vector<8x1xf32> to vector<8x16xf32>
    %101 = arith.mulf %99, %100 : vector<8x16xf32>
    %102 = arith.truncf %101 : vector<8x16xf32> to vector<8x16xbf16>
    %c32 = arith.constant 32 : index
    %c0_37 = arith.constant 0 : index
    %103 = vector.load %arg6[%c32, %c0_37] : memref<64x64xbf16, #tpu.memory_space<vmem>>, vector<16x64xbf16>
    %cst_38 = arith.constant dense<0.000000e+00> : vector<8x64xf32>
    %104 = tpu.matmul %102, %103, %cst_38 {dimension_numbers = #tpu.dot_dimension_numbers<[1], [0], [0], [1], [0, 0, 1, 1], [], []>} : vector<8x16xbf16>, vector<16x64xbf16>, vector<8x64xf32> -> vector<8x64xf32>
    %105 = arith.addf %83, %104 : vector<8x64xf32>
    %106 = vector.extract_strided_slice %33 {offsets = [0, 48], sizes = [8, 16], strides = [1, 1]} : vector<8x192xbf16> to vector<8x16xbf16>
    %107 = vector.extract_strided_slice %33 {offsets = [0, 112], sizes = [8, 16], strides = [1, 1]} : vector<8x192xbf16> to vector<8x16xbf16>
    %108 = vector.extract_strided_slice %33 {offsets = [0, 176], sizes = [8, 16], strides = [1, 1]} : vector<8x192xbf16> to vector<8x16xbf16>
    %cst_39 = arith.constant dense<0.000000e+00> : vector<8x8xf32>
    %109 = tpu.matmul %106, %107, %cst_39 {dimension_numbers = #tpu.dot_dimension_numbers<[1], [1], [0], [0], [0, 0, 1, 0], [], []>} : vector<8x16xbf16>, vector<8x16xbf16>, vector<8x8xf32> -> vector<8x8xf32>
    %cst_40 = arith.constant -1.000000e+30 : f32
    %110 = vector.broadcast %cst_40 : f32 to vector<8x8xf32>
    %111 = arith.select %36, %109, %110 : vector<8x8xi1>, vector<8x8xf32>
    %cst_41 = arith.constant dense<0xFF800000> : vector<8xf32>
    %112 = vector.multi_reduction <maximumf>, %111, %cst_41 [1] : vector<8x8xf32> to vector<8xf32>
    %113 = vector.shape_cast %112 : vector<8xf32> to vector<8x1xf32>
    %114 = vector.broadcast %113 : vector<8x1xf32> to vector<8x8xf32>
    %115 = arith.subf %111, %114 : vector<8x8xf32>
    %116 = math.exp %115 : vector<8x8xf32>
    %cst_42 = arith.constant dense<0.000000e+00> : vector<8xf32>
    %117 = vector.multi_reduction <add>, %116, %cst_42 [1] : vector<8x8xf32> to vector<8xf32>
    %118 = vector.shape_cast %117 : vector<8xf32> to vector<8x1xf32>
    %119 = tpu.reciprocal %118 {approx = true} : vector<8x1xf32> -> vector<8x1xf32>
    %120 = arith.truncf %116 : vector<8x8xf32> to vector<8x8xbf16>
    %cst_43 = arith.constant dense<0.000000e+00> : vector<8x16xf32>
    %121 = tpu.matmul %120, %108, %cst_43 {dimension_numbers = #tpu.dot_dimension_numbers<[1], [0], [0], [1], [0, 0, 1, 1], [], []>} : vector<8x8xbf16>, vector<8x16xbf16>, vector<8x16xf32> -> vector<8x16xf32>
    %122 = vector.broadcast %119 : vector<8x1xf32> to vector<8x16xf32>
    %123 = arith.mulf %121, %122 : vector<8x16xf32>
    %124 = arith.truncf %123 : vector<8x16xf32> to vector<8x16xbf16>
    %c48 = arith.constant 48 : index
    %c0_44 = arith.constant 0 : index
    %125 = vector.load %arg6[%c48, %c0_44] : memref<64x64xbf16, #tpu.memory_space<vmem>>, vector<16x64xbf16>
    %cst_45 = arith.constant dense<0.000000e+00> : vector<8x64xf32>
    %126 = tpu.matmul %124, %125, %cst_45 {dimension_numbers = #tpu.dot_dimension_numbers<[1], [0], [0], [1], [0, 0, 1, 1], [], []>} : vector<8x16xbf16>, vector<16x64xbf16>, vector<8x64xf32> -> vector<8x64xf32>
    %127 = arith.addf %105, %126 : vector<8x64xf32>
    %128 = arith.truncf %127 : vector<8x64xf32> to vector<8x64xbf16>
    %c0_46 = arith.constant 0 : index
    %c0_47 = arith.constant 0 : index
    %c0_48 = arith.constant 0 : index
    %129 = vector.load %arg8[%c0_46, %c0_47, %c0_48] : memref<1x8x64xbf16, #tpu.memory_space<vmem>>, vector<1x8x64xbf16>
    %130 = vector.shape_cast %129 : vector<1x8x64xbf16> to vector<8x64xbf16>
    %131 = vector.shape_cast %128 : vector<8x64xbf16> to vector<1x8x64xbf16>
    tpu.vector_store %arg8[%c0_46, %c0_47, %c0_48], %131 {strides = array<i32>} : memref<1x8x64xbf16, #tpu.memory_space<vmem>>, vector<1x8x64xbf16>,
    return
  }
  func.func @transform_0(%arg0: i32) -> (i32, i32, i32) {
    %c0_i32 = arith.constant 0 : i32
    %c0_i32_0 = arith.constant 0 : i32
    %c0_i32_1 = arith.constant 0 : i32
    return %arg0, %c0_i32, %c0_i32_0 : i32, i32, i32
  }
  func.func @transform_1(%arg0: i32) -> (i32, i32) {
    %c0_i32 = arith.constant 0 : i32
    %c0_i32_0 = arith.constant 0 : i32
    %c0_i32_1 = arith.constant 0 : i32
    return %c0_i32, %c0_i32_0 : i32, i32
  }
  func.func @transform_2(%arg0: i32) -> (i32, i32) {
    %c0_i32 = arith.constant 0 : i32
    %c0_i32_0 = arith.constant 0 : i32
    %c0_i32_1 = arith.constant 0 : i32
    return %c0_i32, %c0_i32_0 : i32, i32
  }
  func.func @transform_3(%arg0: i32) -> (i32, i32) {
    %c0_i32 = arith.constant 0 : i32
    %c0_i32_0 = arith.constant 0 : i32
    %c0_i32_1 = arith.constant 0 : i32
    return %c0_i32, %c0_i32_0 : i32, i32
  }
  func.func @transform_4(%arg0: i32) -> (i32, i32) {
    %c0_i32 = arith.constant 0 : i32
    %c0_i32_0 = arith.constant 0 : i32
    %c0_i32_1 = arith.constant 0 : i32
    return %c0_i32, %c0_i32_0 : i32, i32
  }
  func.func @transform_5(%arg0: i32) -> (i32, i32) {
    %c0_i32 = arith.constant 0 : i32
    %c0_i32_0 = arith.constant 0 : i32
    %c0_i32_1 = arith.constant 0 : i32
    return %c0_i32, %c0_i32_0 : i32, i32
  }
  func.func @transform_6(%arg0: i32) -> (i32, i32) {
    %c0_i32 = arith.constant 0 : i32
    %c0_i32_0 = arith.constant 0 : i32
    %c0_i32_1 = arith.constant 0 : i32
    return %c0_i32, %c0_i32_0 : i32, i32
  }
  func.func @transform_7(%arg0: i32) -> (i32, i32, i32) {
    %c0_i32 = arith.constant 0 : i32
    %c0_i32_0 = arith.constant 0 : i32
    %c0_i32_1 = arith.constant 0 : i32
    return %arg0, %c0_i32, %c0_i32_0 : i32, i32, i32
  }
}

module attributes {stable_mosaic.version = 11 : i64} {
  func.func @_mlp_block_kernel(%arg0: i32, %arg1: memref<1x8x64xbf16, #tpu.memory_space<vmem>>, %arg2: memref<1x64xf32, #tpu.memory_space<vmem>>, %arg3: memref<1x64xf32, #tpu.memory_space<vmem>>, %arg4: memref<64x256xbf16, #tpu.memory_space<vmem>>, %arg5: memref<1x256xf32, #tpu.memory_space<vmem>>, %arg6: memref<256x64xbf16, #tpu.memory_space<vmem>>, %arg7: memref<1x64xf32, #tpu.memory_space<vmem>>, %arg8: memref<1x8x64xbf16, #tpu.memory_space<vmem>>) attributes {dimension_semantics = [#tpu.dimension_semantics<parallel>], iteration_bounds = array<i64: 4>, scalar_prefetch = 0 : i64, scratch_operands = 0 : i64, tpu.core_type = #tpu.core_type<tc>, window_params = [{transform_indices = @transform_0, window_bounds = array<i64: 1, 8, 64>}, {pipeline_mode = #tpu.pipeline_mode<synchronous>, transform_indices = @transform_1, window_bounds = array<i64: 1, 64>}, {pipeline_mode = #tpu.pipeline_mode<synchronous>, transform_indices = @transform_2, window_bounds = array<i64: 1, 64>}, {pipeline_mode = #tpu.pipeline_mode<synchronous>, transform_indices = @transform_3, window_bounds = array<i64: 64, 256>}, {pipeline_mode = #tpu.pipeline_mode<synchronous>, transform_indices = @transform_4, window_bounds = array<i64: 1, 256>}, {pipeline_mode = #tpu.pipeline_mode<synchronous>, transform_indices = @transform_5, window_bounds = array<i64: 256, 64>}, {pipeline_mode = #tpu.pipeline_mode<synchronous>, transform_indices = @transform_6, window_bounds = array<i64: 1, 64>}, {transform_indices = @transform_7, window_bounds = array<i64: 1, 8, 64>}]} {
    %c0 = arith.constant 0 : index
    %c0_0 = arith.constant 0 : index
    %c0_1 = arith.constant 0 : index
    %0 = vector.load %arg1[%c0, %c0_0, %c0_1] : memref<1x8x64xbf16, #tpu.memory_space<vmem>>, vector<1x8x64xbf16>
    %1 = vector.shape_cast %0 : vector<1x8x64xbf16> to vector<8x64xbf16>
    %2 = arith.extf %1 : vector<8x64xbf16> to vector<8x64xf32>
    %cst = arith.constant dense<0.000000e+00> : vector<8xf32>
    %3 = vector.multi_reduction <add>, %2, %cst [1] : vector<8x64xf32> to vector<8xf32>
    %4 = vector.shape_cast %3 : vector<8xf32> to vector<8x1xf32>
    %cst_2 = arith.constant 6.400000e+01 : f32
    %5 = vector.broadcast %cst_2 : f32 to vector<8x1xf32>
    %6 = arith.divf %4, %5 : vector<8x1xf32>
    %7 = vector.broadcast %6 : vector<8x1xf32> to vector<8x64xf32>
    %8 = arith.subf %2, %7 : vector<8x64xf32>
    %9 = arith.mulf %8, %8 : vector<8x64xf32>
    %cst_3 = arith.constant dense<0.000000e+00> : vector<8xf32>
    %10 = vector.multi_reduction <add>, %9, %cst_3 [1] : vector<8x64xf32> to vector<8xf32>
    %11 = vector.shape_cast %10 : vector<8xf32> to vector<8x1xf32>
    %cst_4 = arith.constant 6.400000e+01 : f32
    %12 = vector.broadcast %cst_4 : f32 to vector<8x1xf32>
    %13 = arith.divf %11, %12 : vector<8x1xf32>
    %14 = vector.broadcast %6 : vector<8x1xf32> to vector<8x64xf32>
    %15 = arith.subf %2, %14 : vector<8x64xf32>
    %cst_5 = arith.constant 9.99999997E-7 : f32
    %16 = vector.broadcast %cst_5 : f32 to vector<8x1xf32>
    %17 = arith.addf %13, %16 : vector<8x1xf32>
    %18 = math.rsqrt %17 : vector<8x1xf32>
    %19 = vector.broadcast %18 : vector<8x1xf32> to vector<8x64xf32>
    %20 = arith.mulf %15, %19 : vector<8x64xf32>
    %c0_6 = arith.constant 0 : index
    %c0_7 = arith.constant 0 : index
    %21 = vector.load %arg2[%c0_6, %c0_7] : memref<1x64xf32, #tpu.memory_space<vmem>>, vector<1x64xf32>
    %22 = vector.broadcast %21 : vector<1x64xf32> to vector<8x64xf32>
    %23 = arith.mulf %20, %22 : vector<8x64xf32>
    %c0_8 = arith.constant 0 : index
    %c0_9 = arith.constant 0 : index
    %24 = vector.load %arg3[%c0_8, %c0_9] : memref<1x64xf32, #tpu.memory_space<vmem>>, vector<1x64xf32>
    %25 = vector.broadcast %24 : vector<1x64xf32> to vector<8x64xf32>
    %26 = arith.addf %23, %25 : vector<8x64xf32>
    %27 = arith.truncf %26 : vector<8x64xf32> to vector<8x64xbf16>
    %c0_10 = arith.constant 0 : index
    %c0_11 = arith.constant 0 : index
    %28 = vector.load %arg4[%c0_10, %c0_11] : memref<64x256xbf16, #tpu.memory_space<vmem>>, vector<64x256xbf16>
    %cst_12 = arith.constant dense<0.000000e+00> : vector<8x256xf32>
    %29 = tpu.matmul %27, %28, %cst_12 {dimension_numbers = #tpu.dot_dimension_numbers<[1], [0], [0], [1], [0, 0, 1, 1], [], []>} : vector<8x64xbf16>, vector<64x256xbf16>, vector<8x256xf32> -> vector<8x256xf32>
    %c0_13 = arith.constant 0 : index
    %c0_14 = arith.constant 0 : index
    %30 = vector.load %arg5[%c0_13, %c0_14] : memref<1x256xf32, #tpu.memory_space<vmem>>, vector<1x256xf32>
    %31 = vector.broadcast %30 : vector<1x256xf32> to vector<8x256xf32>
    %32 = arith.addf %29, %31 : vector<8x256xf32>
    %cst_15 = arith.constant 5.000000e-01 : f32
    %33 = vector.broadcast %cst_15 : f32 to vector<8x256xf32>
    %34 = arith.mulf %33, %32 : vector<8x256xf32>
    %cst_16 = arith.constant 4.471500e-02 : f32
    %35 = vector.broadcast %cst_16 : f32 to vector<8x256xf32>
    %36 = arith.mulf %35, %32 : vector<8x256xf32>
    %37 = arith.mulf %36, %32 : vector<8x256xf32>
    %38 = arith.mulf %37, %32 : vector<8x256xf32>
    %39 = arith.addf %32, %38 : vector<8x256xf32>
    %cst_17 = arith.constant 0.797884583 : f32
    %40 = vector.broadcast %cst_17 : f32 to vector<8x256xf32>
    %41 = arith.mulf %40, %39 : vector<8x256xf32>
    %42 = math.tanh %41 : vector<8x256xf32>
    %cst_18 = arith.constant 1.000000e+00 : f32
    %43 = vector.broadcast %cst_18 : f32 to vector<8x256xf32>
    %44 = arith.addf %43, %42 : vector<8x256xf32>
    %45 = arith.mulf %34, %44 : vector<8x256xf32>
    %46 = arith.truncf %45 : vector<8x256xf32> to vector<8x256xbf16>
    %c0_19 = arith.constant 0 : index
    %c0_20 = arith.constant 0 : index
    %47 = vector.load %arg6[%c0_19, %c0_20] : memref<256x64xbf16, #tpu.memory_space<vmem>>, vector<256x64xbf16>
    %cst_21 = arith.constant dense<0.000000e+00> : vector<8x64xf32>
    %48 = tpu.matmul %46, %47, %cst_21 {dimension_numbers = #tpu.dot_dimension_numbers<[1], [0], [0], [1], [0, 0, 1, 1], [], []>} : vector<8x256xbf16>, vector<256x64xbf16>, vector<8x64xf32> -> vector<8x64xf32>
    %c0_22 = arith.constant 0 : index
    %c0_23 = arith.constant 0 : index
    %49 = vector.load %arg7[%c0_22, %c0_23] : memref<1x64xf32, #tpu.memory_space<vmem>>, vector<1x64xf32>
    %50 = vector.broadcast %49 : vector<1x64xf32> to vector<8x64xf32>
    %51 = arith.addf %48, %50 : vector<8x64xf32>
    %52 = arith.addf %51, %2 : vector<8x64xf32>
    %53 = arith.truncf %52 : vector<8x64xf32> to vector<8x64xbf16>
    %c0_24 = arith.constant 0 : index
    %c0_25 = arith.constant 0 : index
    %c0_26 = arith.constant 0 : index
    %54 = vector.load %arg8[%c0_24, %c0_25, %c0_26] : memref<1x8x64xbf16, #tpu.memory_space<vmem>>, vector<1x8x64xbf16>
    %55 = vector.shape_cast %54 : vector<1x8x64xbf16> to vector<8x64xbf16>
    %56 = vector.shape_cast %53 : vector<8x64xbf16> to vector<1x8x64xbf16>
    tpu.vector_store %arg8[%c0_24, %c0_25, %c0_26], %56 {strides = array<i32>} : memref<1x8x64xbf16, #tpu.memory_space<vmem>>, vector<1x8x64xbf16>,
    return
  }
  func.func @transform_0(%arg0: i32) -> (i32, i32, i32) {
    %c0_i32 = arith.constant 0 : i32
    %c0_i32_0 = arith.constant 0 : i32
    %c0_i32_1 = arith.constant 0 : i32
    return %arg0, %c0_i32, %c0_i32_0 : i32, i32, i32
  }
  func.func @transform_1(%arg0: i32) -> (i32, i32) {
    %c0_i32 = arith.constant 0 : i32
    %c0_i32_0 = arith.constant 0 : i32
    %c0_i32_1 = arith.constant 0 : i32
    return %c0_i32, %c0_i32_0 : i32, i32
  }
  func.func @transform_2(%arg0: i32) -> (i32, i32) {
    %c0_i32 = arith.constant 0 : i32
    %c0_i32_0 = arith.constant 0 : i32
    %c0_i32_1 = arith.constant 0 : i32
    return %c0_i32, %c0_i32_0 : i32, i32
  }
  func.func @transform_3(%arg0: i32) -> (i32, i32) {
    %c0_i32 = arith.constant 0 : i32
    %c0_i32_0 = arith.constant 0 : i32
    %c0_i32_1 = arith.constant 0 : i32
    return %c0_i32, %c0_i32_0 : i32, i32
  }
  func.func @transform_4(%arg0: i32) -> (i32, i32) {
    %c0_i32 = arith.constant 0 : i32
    %c0_i32_0 = arith.constant 0 : i32
    %c0_i32_1 = arith.constant 0 : i32
    return %c0_i32, %c0_i32_0 : i32, i32
  }
  func.func @transform_5(%arg0: i32) -> (i32, i32) {
    %c0_i32 = arith.constant 0 : i32
    %c0_i32_0 = arith.constant 0 : i32
    %c0_i32_1 = arith.constant 0 : i32
    return %c0_i32, %c0_i32_0 : i32, i32
  }
  func.func @transform_6(%arg0: i32) -> (i32, i32) {
    %c0_i32 = arith.constant 0 : i32
    %c0_i32_0 = arith.constant 0 : i32
    %c0_i32_1 = arith.constant 0 : i32
    return %c0_i32, %c0_i32_0 : i32, i32
  }
  func.func @transform_7(%arg0: i32) -> (i32, i32, i32) {
    %c0_i32 = arith.constant 0 : i32
    %c0_i32_0 = arith.constant 0 : i32
    %c0_i32_1 = arith.constant 0 : i32
    return %arg0, %c0_i32, %c0_i32_0 : i32, i32, i32
  }
}

module attributes {stable_mosaic.version = 11 : i64} {
  func.func @_head_kernel(%arg0: i32, %arg1: memref<1x2x64xbf16, #tpu.memory_space<vmem>>, %arg2: memref<1x2x64xbf16, #tpu.memory_space<vmem>>, %arg3: memref<1x64xf32, #tpu.memory_space<vmem>>, %arg4: memref<1x64xf32, #tpu.memory_space<vmem>>, %arg5: memref<64x128xbf16, #tpu.memory_space<vmem>>, %arg6: memref<1x128xf32, #tpu.memory_space<vmem>>, %arg7: memref<128x128xbf16, #tpu.memory_space<vmem>>, %arg8: memref<1x128xf32, #tpu.memory_space<vmem>>, %arg9: memref<2x128xf32, #tpu.memory_space<vmem>>) attributes {dimension_semantics = [#tpu.dimension_semantics<arbitrary>], iteration_bounds = array<i64: 1>, scalar_prefetch = 0 : i64, scratch_operands = 0 : i64, tpu.core_type = #tpu.core_type<tc>, window_params = [{transform_indices = @transform_0, window_bounds = array<i64: 1, 2, 64>}, {transform_indices = @transform_1, window_bounds = array<i64: 1, 2, 64>}, {pipeline_mode = #tpu.pipeline_mode<synchronous>, transform_indices = @transform_2, window_bounds = array<i64: 1, 64>}, {pipeline_mode = #tpu.pipeline_mode<synchronous>, transform_indices = @transform_3, window_bounds = array<i64: 1, 64>}, {pipeline_mode = #tpu.pipeline_mode<synchronous>, transform_indices = @transform_4, window_bounds = array<i64: 64, 128>}, {pipeline_mode = #tpu.pipeline_mode<synchronous>, transform_indices = @transform_5, window_bounds = array<i64: 1, 128>}, {pipeline_mode = #tpu.pipeline_mode<synchronous>, transform_indices = @transform_6, window_bounds = array<i64: 128, 128>}, {pipeline_mode = #tpu.pipeline_mode<synchronous>, transform_indices = @transform_7, window_bounds = array<i64: 1, 128>}, {pipeline_mode = #tpu.pipeline_mode<synchronous>, transform_indices = @transform_8, window_bounds = array<i64: 2, 128>}]} {
    %c0 = arith.constant 0 : index
    %c0_0 = arith.constant 0 : index
    %c0_1 = arith.constant 0 : index
    %0 = vector.load %arg1[%c0, %c0_0, %c0_1] : memref<1x2x64xbf16, #tpu.memory_space<vmem>>, vector<1x2x64xbf16>
    %1 = vector.shape_cast %0 : vector<1x2x64xbf16> to vector<2x64xbf16>
    %2 = arith.extf %1 : vector<2x64xbf16> to vector<2x64xf32>
    %cst = arith.constant dense<0.000000e+00> : vector<2xf32>
    %3 = vector.multi_reduction <add>, %2, %cst [1] : vector<2x64xf32> to vector<2xf32>
    %4 = vector.shape_cast %3 : vector<2xf32> to vector<2x1xf32>
    %cst_2 = arith.constant 6.400000e+01 : f32
    %5 = vector.broadcast %cst_2 : f32 to vector<2x1xf32>
    %6 = arith.divf %4, %5 : vector<2x1xf32>
    %7 = vector.broadcast %6 : vector<2x1xf32> to vector<2x64xf32>
    %8 = arith.subf %2, %7 : vector<2x64xf32>
    %9 = arith.mulf %8, %8 : vector<2x64xf32>
    %cst_3 = arith.constant dense<0.000000e+00> : vector<2xf32>
    %10 = vector.multi_reduction <add>, %9, %cst_3 [1] : vector<2x64xf32> to vector<2xf32>
    %11 = vector.shape_cast %10 : vector<2xf32> to vector<2x1xf32>
    %cst_4 = arith.constant 6.400000e+01 : f32
    %12 = vector.broadcast %cst_4 : f32 to vector<2x1xf32>
    %13 = arith.divf %11, %12 : vector<2x1xf32>
    %14 = vector.broadcast %6 : vector<2x1xf32> to vector<2x64xf32>
    %15 = arith.subf %2, %14 : vector<2x64xf32>
    %cst_5 = arith.constant 9.99999997E-7 : f32
    %16 = vector.broadcast %cst_5 : f32 to vector<2x1xf32>
    %17 = arith.addf %13, %16 : vector<2x1xf32>
    %18 = math.rsqrt %17 : vector<2x1xf32>
    %19 = vector.broadcast %18 : vector<2x1xf32> to vector<2x64xf32>
    %20 = arith.mulf %15, %19 : vector<2x64xf32>
    %c0_6 = arith.constant 0 : index
    %c0_7 = arith.constant 0 : index
    %21 = vector.load %arg3[%c0_6, %c0_7] : memref<1x64xf32, #tpu.memory_space<vmem>>, vector<1x64xf32>
    %22 = vector.broadcast %21 : vector<1x64xf32> to vector<2x64xf32>
    %23 = arith.mulf %20, %22 : vector<2x64xf32>
    %c0_8 = arith.constant 0 : index
    %c0_9 = arith.constant 0 : index
    %24 = vector.load %arg4[%c0_8, %c0_9] : memref<1x64xf32, #tpu.memory_space<vmem>>, vector<1x64xf32>
    %25 = vector.broadcast %24 : vector<1x64xf32> to vector<2x64xf32>
    %26 = arith.addf %23, %25 : vector<2x64xf32>
    %c0_10 = arith.constant 0 : index
    %c0_11 = arith.constant 0 : index
    %c0_12 = arith.constant 0 : index
    %27 = vector.load %arg2[%c0_10, %c0_11, %c0_12] : memref<1x2x64xbf16, #tpu.memory_space<vmem>>, vector<1x2x64xbf16>
    %28 = vector.shape_cast %27 : vector<1x2x64xbf16> to vector<2x64xbf16>
    %29 = arith.extf %28 : vector<2x64xbf16> to vector<2x64xf32>
    %cst_13 = arith.constant dense<0.000000e+00> : vector<2xf32>
    %30 = vector.multi_reduction <add>, %29, %cst_13 [1] : vector<2x64xf32> to vector<2xf32>
    %31 = vector.shape_cast %30 : vector<2xf32> to vector<2x1xf32>
    %cst_14 = arith.constant 6.400000e+01 : f32
    %32 = vector.broadcast %cst_14 : f32 to vector<2x1xf32>
    %33 = arith.divf %31, %32 : vector<2x1xf32>
    %34 = vector.broadcast %33 : vector<2x1xf32> to vector<2x64xf32>
    %35 = arith.subf %29, %34 : vector<2x64xf32>
    %36 = arith.mulf %35, %35 : vector<2x64xf32>
    %cst_15 = arith.constant dense<0.000000e+00> : vector<2xf32>
    %37 = vector.multi_reduction <add>, %36, %cst_15 [1] : vector<2x64xf32> to vector<2xf32>
    %38 = vector.shape_cast %37 : vector<2xf32> to vector<2x1xf32>
    %cst_16 = arith.constant 6.400000e+01 : f32
    %39 = vector.broadcast %cst_16 : f32 to vector<2x1xf32>
    %40 = arith.divf %38, %39 : vector<2x1xf32>
    %41 = vector.broadcast %33 : vector<2x1xf32> to vector<2x64xf32>
    %42 = arith.subf %29, %41 : vector<2x64xf32>
    %cst_17 = arith.constant 9.99999997E-7 : f32
    %43 = vector.broadcast %cst_17 : f32 to vector<2x1xf32>
    %44 = arith.addf %40, %43 : vector<2x1xf32>
    %45 = math.rsqrt %44 : vector<2x1xf32>
    %46 = vector.broadcast %45 : vector<2x1xf32> to vector<2x64xf32>
    %47 = arith.mulf %42, %46 : vector<2x64xf32>
    %c0_18 = arith.constant 0 : index
    %c0_19 = arith.constant 0 : index
    %48 = vector.load %arg3[%c0_18, %c0_19] : memref<1x64xf32, #tpu.memory_space<vmem>>, vector<1x64xf32>
    %49 = vector.broadcast %48 : vector<1x64xf32> to vector<2x64xf32>
    %50 = arith.mulf %47, %49 : vector<2x64xf32>
    %c0_20 = arith.constant 0 : index
    %c0_21 = arith.constant 0 : index
    %51 = vector.load %arg4[%c0_20, %c0_21] : memref<1x64xf32, #tpu.memory_space<vmem>>, vector<1x64xf32>
    %52 = vector.broadcast %51 : vector<1x64xf32> to vector<2x64xf32>
    %53 = arith.addf %50, %52 : vector<2x64xf32>
    %54 = arith.subf %26, %53 : vector<2x64xf32>
    %55 = arith.truncf %54 : vector<2x64xf32> to vector<2x64xbf16>
    %c0_22 = arith.constant 0 : index
    %c0_23 = arith.constant 0 : index
    %56 = vector.load %arg5[%c0_22, %c0_23] : memref<64x128xbf16, #tpu.memory_space<vmem>>, vector<64x128xbf16>
    %cst_24 = arith.constant dense<0.000000e+00> : vector<2x128xf32>
    %57 = tpu.matmul %55, %56, %cst_24 {dimension_numbers = #tpu.dot_dimension_numbers<[1], [0], [0], [1], [0, 0, 1, 1], [], []>} : vector<2x64xbf16>, vector<64x128xbf16>, vector<2x128xf32> -> vector<2x128xf32>
    %c0_25 = arith.constant 0 : index
    %c0_26 = arith.constant 0 : index
    %58 = vector.load %arg6[%c0_25, %c0_26] : memref<1x128xf32, #tpu.memory_space<vmem>>, vector<1x128xf32>
    %59 = vector.broadcast %58 : vector<1x128xf32> to vector<2x128xf32>
    %60 = arith.addf %57, %59 : vector<2x128xf32>
    %cst_27 = arith.constant 0.000000e+00 : f32
    %61 = vector.broadcast %cst_27 : f32 to vector<2x128xf32>
    %62 = arith.maximumf %60, %61 : vector<2x128xf32>
    %63 = vector.broadcast %58 : vector<1x128xf32> to vector<2x128xf32>
    %64 = arith.subf %63, %57 : vector<2x128xf32>
    %cst_28 = arith.constant 0.000000e+00 : f32
    %65 = vector.broadcast %cst_28 : f32 to vector<2x128xf32>
    %66 = arith.maximumf %64, %65 : vector<2x128xf32>
    %67 = arith.addf %62, %66 : vector<2x128xf32>
    %cst_29 = arith.constant 5.000000e-01 : f32
    %68 = vector.broadcast %cst_29 : f32 to vector<2x128xf32>
    %69 = arith.mulf %68, %67 : vector<2x128xf32>
    %70 = arith.truncf %69 : vector<2x128xf32> to vector<2x128xbf16>
    %c0_30 = arith.constant 0 : index
    %c0_31 = arith.constant 0 : index
    %71 = vector.load %arg7[%c0_30, %c0_31] : memref<128x128xbf16, #tpu.memory_space<vmem>>, vector<128x128xbf16>
    %cst_32 = arith.constant dense<0.000000e+00> : vector<2x128xf32>
    %72 = tpu.matmul %70, %71, %cst_32 {dimension_numbers = #tpu.dot_dimension_numbers<[1], [0], [0], [1], [0, 0, 1, 1], [], []>} : vector<2x128xbf16>, vector<128x128xbf16>, vector<2x128xf32> -> vector<2x128xf32>
    %c0_33 = arith.constant 0 : index
    %c0_34 = arith.constant 0 : index
    %73 = vector.load %arg8[%c0_33, %c0_34] : memref<1x128xf32, #tpu.memory_space<vmem>>, vector<1x128xf32>
    %74 = vector.broadcast %73 : vector<1x128xf32> to vector<2x128xf32>
    %75 = arith.addf %72, %74 : vector<2x128xf32>
    %c0_35 = arith.constant 0 : index
    %c0_36 = arith.constant 0 : index
    %76 = vector.load %arg9[%c0_35, %c0_36] : memref<2x128xf32, #tpu.memory_space<vmem>>, vector<2x128xf32>
    tpu.vector_store %arg9[%c0_35, %c0_36], %75 {strides = array<i32>} : memref<2x128xf32, #tpu.memory_space<vmem>>, vector<2x128xf32>,
    return
  }
  func.func @transform_0(%arg0: i32) -> (i32, i32, i32) {
    %c0_i32 = arith.constant 0 : i32
    %c0_i32_0 = arith.constant 0 : i32
    %c0_i32_1 = arith.constant 0 : i32
    %c0_i32_2 = arith.constant 0 : i32
    return %c0_i32, %c0_i32_0, %c0_i32_1 : i32, i32, i32
  }
  func.func @transform_1(%arg0: i32) -> (i32, i32, i32) {
    %c1_i32 = arith.constant 1 : i32
    %c0_i32 = arith.constant 0 : i32
    %c0_i32_0 = arith.constant 0 : i32
    %c0_i32_1 = arith.constant 0 : i32
    return %c1_i32, %c0_i32, %c0_i32_0 : i32, i32, i32
  }
  func.func @transform_2(%arg0: i32) -> (i32, i32) {
    %c0_i32 = arith.constant 0 : i32
    %c0_i32_0 = arith.constant 0 : i32
    %c0_i32_1 = arith.constant 0 : i32
    return %c0_i32, %c0_i32_0 : i32, i32
  }
  func.func @transform_3(%arg0: i32) -> (i32, i32) {
    %c0_i32 = arith.constant 0 : i32
    %c0_i32_0 = arith.constant 0 : i32
    %c0_i32_1 = arith.constant 0 : i32
    return %c0_i32, %c0_i32_0 : i32, i32
  }
  func.func @transform_4(%arg0: i32) -> (i32, i32) {
    %c0_i32 = arith.constant 0 : i32
    %c0_i32_0 = arith.constant 0 : i32
    %c0_i32_1 = arith.constant 0 : i32
    return %c0_i32, %c0_i32_0 : i32, i32
  }
  func.func @transform_5(%arg0: i32) -> (i32, i32) {
    %c0_i32 = arith.constant 0 : i32
    %c0_i32_0 = arith.constant 0 : i32
    %c0_i32_1 = arith.constant 0 : i32
    return %c0_i32, %c0_i32_0 : i32, i32
  }
  func.func @transform_6(%arg0: i32) -> (i32, i32) {
    %c0_i32 = arith.constant 0 : i32
    %c0_i32_0 = arith.constant 0 : i32
    %c0_i32_1 = arith.constant 0 : i32
    return %c0_i32, %c0_i32_0 : i32, i32
  }
  func.func @transform_7(%arg0: i32) -> (i32, i32) {
    %c0_i32 = arith.constant 0 : i32
    %c0_i32_0 = arith.constant 0 : i32
    %c0_i32_1 = arith.constant 0 : i32
    return %c0_i32, %c0_i32_0 : i32, i32
  }
  func.func @transform_8(%arg0: i32) -> (i32, i32) {
    %c0_i32 = arith.constant 0 : i32
    %c0_i32_0 = arith.constant 0 : i32
    %c0_i32_1 = arith.constant 0 : i32
    return %c0_i32, %c0_i32_0 : i32, i32
  }
}

</mosaic_0001>

<llo_original>
// kernel: model_forward.6
$region0: #{model_forward.6}
  #allocation0 [shape = 'u32[]', space=smem, size = 0x4, offset = 0x4, fixed_abs, tag = 'smem constant byte address 0x4 - core index']
  #allocation1 [shape = 'u32[72,128]{1,0:T(1,128)}', space=vmem, size = 0x9000, scoped, tag = 'internal scratch']
  #allocation2 [shape = 'f32[8,64]{1,0:T(8,128)}', space=vmem, size = 0x1000, scoped, tag = 'scratch operand']
  %s0 = inlined_call_operand.vmem [shape: bf16[16,768], index: 0, kind: input, shape index: {}]
  %s1 = inlined_call_operand.vmem [shape: bf16[768,64], index: 1, kind: input, shape index: {}]
  %s2 = inlined_call_operand.vmem [shape: f32[1,64], index: 2, kind: input, shape index: {}]
  %s3 = inlined_call_operand.vmem [shape: f32[16,64], index: 3, kind: output, shape index: {}]
  %s4 = sld [smem:[#allocation0]]
  $region53: #{model_forward.6} parent=0
    _
  %s6 = ssub.s32 1, %s4
  %s7 = scalar_select 0, %s6, %s4
  loop: start=0, step=1, limit=8
  $region2: #{model_forward.6} parent=0 // loop_pre_header
    _
  $region3: #{model_forward.6} parent=0 // loop_header
    %s9 = sphi 0, %s13
    %p10 = scmp.ge.s32.totalorder %s9, 8
    %s16 = sphi 0, %s35
    %s17 = sphi 0, %s31
    %s18 = sphi 0, %s27
    %s19 = sphi 0, %s16
    %s20 = sphi 0, %s17
    %s21 = sphi 0, %s18
    %s22 = sphi 0, %s19
    %s23 = sphi 0, %s20
    %s24 = sphi 0, %s21
    %s40 = sphi 0, %s42
    %s43 = sphi 0, %s40
    %s44 = sphi 0, %s43
    %s60 = sphi 0, %s44
    %s68 = sphi 0, %s70
    %s71 = sphi 0, %s68
    %s72 = sphi 0, %s71
    %s88 = sphi 0, %s72
    %s94 = sphi 0, %s96
    %s97 = sphi 0, %s94
    %s98 = sphi 0, %s97
    %s114 = sphi 0, %s98
    %s122 = sphi 0, %s124
    %s125 = sphi 0, %s122
    %s126 = sphi 0, %s125
    %s142 = sphi 0, %s126
  $region4: #{model_forward.6} parent=0 // loop_header_branch
    %12 = sbr.rel (%p10) target = $region8
  $region5: #{model_forward.6} parent=0 // loop_body
    %s14 = ssub.s32 %s9, 1
    %s15 = ssub.s32 %s9, 2
    %s25 = sadd.s32 1, %s18
    %p26 = scmp.ge.s32.totalorder %s25, 3
    %s27 = scalar_select %p26, 0, %s25
    %s28 = sadd.s32 1, %s17
    %s29 = scalar_select %p26, %s28, %s17
    %p30 = scmp.ge.s32.totalorder %s29, 1
    %s31 = scalar_select %p30, 0, %s29
    %s32 = sadd.s32 1, %s16
    %s33 = scalar_select %p30, %s32, %s16
    %p34 = scmp.ge.s32.totalorder %s33, 2
    %s35 = scalar_select %p34, 0, %s33
    %s36 = ssub.s32 %s16, %s35
    %s37 = ssub.s32 %s18, %s27
    %s38 = sor.u32 %s36, %s37
    %p39 = scmp.eq.s32.totalorder %s38, 0
    %s41 = sadd.s32 %s40, 1
    %s42 = scalar_select %p39, %s40, %s41
    %p45 = pneg %p39
    %p46 = scmp.eq.s32.totalorder %s9, 5
    %p47 = por %p45, %p46
    %p48 = scmp.ne.s32.totalorder %s40, %s43
    %p49 = scmp.eq.s32.totalorder %s9, 0
    %p50 = por %p48, %p49
    %p51 = scmp.ne.s32.totalorder %s40, %s43
    %p52 = scmp.eq.s32.totalorder %s14, 5
    %p53 = por %p51, %p52
    %p54 = scmp.ne.s32.totalorder %s43, %s44
    %p55 = scmp.eq.s32.totalorder %s14, 0
    %p56 = por %p54, %p55
    %p57 = scmp.ne.s32.totalorder %s43, %s44
    %p58 = scmp.eq.s32.totalorder %s15, 5
    %p59 = por %p57, %p58
    %p61 = scmp.ne.s32.totalorder %s44, %s60
    %p62 = scmp.eq.s32.totalorder %s15, 0
    %p63 = por %p61, %p62
    %s64 = ssub.s32 %s18, %s27
    %s65 = ssub.s32 %s17, %s31
    %s66 = sor.u32 %s64, %s65
    %p67 = scmp.eq.s32.totalorder %s66, 0
    %s69 = sadd.s32 %s68, 1
    %s70 = scalar_select %p67, %s68, %s69
    %p73 = pneg %p67
    %p74 = scmp.eq.s32.totalorder %s9, 5
    %p75 = por %p73, %p74
    %p76 = scmp.ne.s32.totalorder %s68, %s71
    %p77 = scmp.eq.s32.totalorder %s9, 0
    %p78 = por %p76, %p77
    %p79 = scmp.ne.s32.totalorder %s68, %s71
    %p80 = scmp.eq.s32.totalorder %s14, 5
    %p81 = por %p79, %p80
    %p82 = scmp.ne.s32.totalorder %s71, %s72
    %p83 = scmp.eq.s32.totalorder %s14, 0
    %p84 = por %p82, %p83
    %p85 = scmp.ne.s32.totalorder %s71, %s72
    %p86 = scmp.eq.s32.totalorder %s15, 5
    %p87 = por %p85, %p86
    %p89 = scmp.ne.s32.totalorder %s72, %s88
    %p90 = scmp.eq.s32.totalorder %s15, 0
    %p91 = por %p89, %p90
    %s92 = ssub.s32 %s17, %s31
    %p93 = scmp.eq.s32.totalorder %s92, 0
    %s95 = sadd.s32 %s94, 1
    %s96 = scalar_select %p93, %s94, %s95
    %p99 = pneg %p93
    %p100 = scmp.eq.s32.totalorder %s9, 5
    %p101 = por %p99, %p100
    %p102 = scmp.ne.s32.totalorder %s94, %s97
    %p103 = scmp.eq.s32.totalorder %s9, 0
    %p104 = por %p102, %p103
    %p105 = scmp.ne.s32.totalorder %s94, %s97
    %p106 = scmp.eq.s32.totalorder %s14, 5
    %p107 = por %p105, %p106
    %p108 = scmp.ne.s32.totalorder %s97, %s98
    %p109 = scmp.eq.s32.totalorder %s14, 0
    %p110 = por %p108, %p109
    %p111 = scmp.ne.s32.totalorder %s97, %s98
    %p112 = scmp.eq.s32.totalorder %s15, 5
    %p113 = por %p111, %p112
    %p115 = scmp.ne.s32.totalorder %s98, %s114
    %p116 = scmp.eq.s32.totalorder %s15, 0
    %p117 = por %p115, %p116
    %s118 = ssub.s32 %s16, %s35
    %s119 = ssub.s32 %s17, %s31
    %s120 = sor.u32 %s118, %s119
    %p121 = scmp.eq.s32.totalorder %s120, 0
    %s123 = sadd.s32 %s122, 1
    %s124 = scalar_select %p121, %s122, %s123
    %p127 = pneg %p121
    %p128 = scmp.eq.s32.totalorder %s9, 5
    %p129 = por %p127, %p128
    %p130 = scmp.ne.s32.totalorder %s122, %s125
    %p131 = scmp.eq.s32.totalorder %s9, 0
    %p132 = por %p130, %p131
    %p133 = scmp.ne.s32.totalorder %s122, %s125
    %p134 = scmp.eq.s32.totalorder %s14, 5
    %p135 = por %p133, %p134
    %p136 = scmp.ne.s32.totalorder %s125, %s126
    %p137 = scmp.eq.s32.totalorder %s14, 0
    %p138 = por %p136, %p137
    %p139 = scmp.ne.s32.totalorder %s125, %s126
    %p140 = scmp.eq.s32.totalorder %s15, 5
    %p141 = por %p139, %p140
    %p143 = scmp.ne.s32.totalorder %s126, %s142
    %p144 = scmp.eq.s32.totalorder %s15, 0
    %p145 = por %p143, %p144
    %p146 = scmp.le.s32.totalorder 1, %s9
    %p147 = scmp.lt.s32.totalorder %s9, 7
    %p148 = pnand %p146, %p147
    %p149 = pneg %p148
    // Predicated region
    $region9: #{model_forward.6} parent=5 // pred_check
      _
    $region10: #{model_forward.6} parent=5 // pred_check_branch
      %151 = sbr.rel (%p148) target = $region12
    $region11: #{model_forward.6} parent=5 // pred_region
      %s152 = ssub.s32 %s9, 1
      // Predicated region
      $region13: #{model_forward.6} parent=11 // pred_check
        %p153 = pneg %p110
      $region14: #{model_forward.6} parent=11 // pred_check_branch
        %155 = sbr.rel (%p153) target = $region16
      $region15: #{model_forward.6} parent=11 // pred_region
        %p156 = scmp.lt.s32.totalorder %s20, 0
        %s157 = scalar_select %p156, %s20, 0
        %s158 = scalar_lea.vmem %s2, %s157
      $region16: #{model_forward.6} parent=11 // pred_fallthru
        _
    $region12: #{model_forward.6} parent=5 // pred_fallthru
      _
    %p159 = scmp.lt.s32.totalorder %s9, 6
    // Predicated region
    $region17: #{model_forward.6} parent=5 // pred_check
      %p160 = pneg %p159
    $region18: #{model_forward.6} parent=5 // pred_check_branch
      %162 = sbr.rel (%p160) target = $region20
    $region19: #{model_forward.6} parent=5 // pred_region
      // Predicated region
      $region21: #{model_forward.6} parent=19 // pred_check
        %p163 = pneg %p50
      $region22: #{model_forward.6} parent=19 // pred_check_branch
        %165 = sbr.rel (%p163) target = $region24
      $region23: #{model_forward.6} parent=19 // pred_region
        %s166 = smul.u32 2, %s18
        %p167 = scmp.lt.s32.totalorder %s16, 1
        %s168 = scalar_select %p167, %s16, 1
        %p169 = scmp.lt.s32.totalorder %s166, 5
        %s170 = scalar_select %p169, %s166, 5
        %s171 = smul.addr %s168, 6
        %s172 = sadd.s32 %s170, %s171
        %s173 = smul.addr %s172, 4
        %s174 = scalar_lea.vmem %s0, %s173
        %s175 = smul.u32 2, %s18
      $region24: #{model_forward.6} parent=19 // pred_fallthru
        _
      // Predicated region
      $region25: #{model_forward.6} parent=19 // pred_check
        %p176 = pneg %p78
      $region26: #{model_forward.6} parent=19 // pred_check_branch
        %178 = sbr.rel (%p176) target = $region28
      $region27: #{model_forward.6} parent=19 // pred_region
        %s179 = smul.u32 32, %s18
        %p180 = scmp.lt.s32.totalorder %s179, 95
        %s181 = scalar_select %p180, %s179, 95
        %p182 = scmp.lt.s32.totalorder %s17, 0
        %s183 = scalar_select %p182, %s17, 0
        %s184 = sadd.s32 %s183, %s181
        %s185 = smul.addr %s184, 4
        %s186 = scalar_lea.vmem %s1, %s185
        %s187 = smul.u32 32, %s18
      $region28: #{model_forward.6} parent=19 // pred_fallthru
        _
    $region20: #{model_forward.6} parent=5 // pred_fallthru
      _
    %p188 = scmp.le.s32.totalorder 1, %s9
    %p189 = scmp.lt.s32.totalorder %s9, 7
    %p190 = pnand %p188, %p189
    %p191 = pneg %p190
    // Predicated region
    $region29: #{model_forward.6} parent=5 // pred_check
      _
    $region30: #{model_forward.6} parent=5 // pred_check_branch
      %193 = sbr.rel (%p190) target = $region32
    $region31: #{model_forward.6} parent=5 // pred_region
      %s194 = ssub.s32 %s9, 1
      %s195 = smul.u32 2, %s21
      %p196 = scmp.lt.s32.totalorder %s19, 1
      %s197 = scalar_select %p196, %s19, 1
      %p198 = scmp.lt.s32.totalorder %s195, 5
      %s199 = scalar_select %p198, %s195, 5
      %s200 = smul.addr %s197, 6
      %s201 = sadd.s32 %s199, %s200
      %s202 = smul.addr %s201, 4
      %s203 = scalar_lea.vmem %s0, %s202
      %p204 = pneg %p56
      %p205 = pneg %p53
      %s206 = smul.u32 32, %s21
      %p207 = scmp.lt.s32.totalorder %s206, 95
      %s208 = scalar_select %p207, %s206, 95
      %p209 = scmp.lt.s32.totalorder %s20, 0
      %s210 = scalar_select %p209, %s20, 0
      %s211 = sadd.s32 %s210, %s208
      %s212 = smul.addr %s211, 4
      %s213 = scalar_lea.vmem %s1, %s212
      %p214 = pneg %p84
      %p215 = pneg %p81
      %p216 = scmp.lt.s32.totalorder %s20, 0
      %s217 = scalar_select %p216, %s20, 0
      %s218 = scalar_lea.vmem %s2, %s217
      %p219 = pneg %p110
      %p220 = pneg %p107
      %p221 = pneg %p138
      %p222 = pneg %p135
      %p223 = scmp.lt.s32.totalorder %s19, 1
      %s224 = scalar_select %p223, %s19, 1
      %p225 = scmp.lt.s32.totalorder %s20, 0
      %s226 = scalar_select %p225, %s20, 0
      %s227 = sadd.s32 %s226, %s224
      %s228 = smul.addr %s227, 8
      %s229 = scalar_lea.vmem %s3, %s228
      %s230 = smul.u32 2, %s21
      %p231 = scmp.lt.s32.totalorder %s19, 1
      %s232 = scalar_select %p231, %s19, 1
      %p233 = scmp.lt.s32.totalorder %s230, 5
      %s234 = scalar_select %p233, %s230, 5
      %s235 = smul.addr %s232, 6
      %s236 = sadd.s32 %s234, %s235
      %s237 = smul.addr %s236, 4
      %s238 = scalar_lea.vmem %s0, %s237
      %s239 = smul.u32 2, %s21
      %s240 = smul.u32 32, %s21
      %p241 = scmp.lt.s32.totalorder %s240, 95
      %s242 = scalar_select %p241, %s240, 95
      %p243 = scmp.lt.s32.totalorder %s20, 0
      %s244 = scalar_select %p243, %s20, 0
      %s245 = sadd.s32 %s244, %s242
      %s246 = smul.addr %s245, 4
      %s247 = scalar_lea.vmem %s1, %s246
      %s248 = smul.u32 32, %s21
      %p249 = scmp.lt.s32.totalorder %s20, 0
      %s250 = scalar_select %p249, %s20, 0
      %s251 = scalar_lea.vmem %s2, %s250
      %p252 = scmp.lt.s32.totalorder %s19, 1
      %s253 = scalar_select %p252, %s19, 1
      %p254 = scmp.lt.s32.totalorder %s20, 0
      %s255 = scalar_select %p254, %s20, 0
      %s256 = sadd.s32 %s255, %s253
      %s257 = smul.addr %s256, 8
      %s258 = scalar_lea.vmem %s3, %s257
      %p259 = scmp.eq.s32.totalorder %s21, 0
      // Predicated region
      $region33: #{model_forward.6} parent=31 // pred_check
        %p260 = pneg %p259
      $region34: #{model_forward.6} parent=31 // pred_check_branch
        %262 = sbr.rel (%p260) target = $region36
      $region35: #{model_forward.6} parent=31 // pred_region
        %vm263 = vcmask 523264
        %264 = vst.msk [vmem:[#allocation2] sm:$0xff] %vm263, 0.0
      $region36: #{model_forward.6} parent=31 // pred_fallthru
        _
      %v265 = vld [vmem:[#allocation2] sm:$0xff]
      %v266 = vld [vmem:[%s238] sm:$0xff]
      %v267 = vld [vmem:[%s247] sm:$0xf]
      %v268 = vld [vmem:[%s247 + $0x4] sm:$0xf]
      %v269 = vld [vmem:[%s247 + $0x8] sm:$0xf]
      %v270 = vld [vmem:[%s247 + $0xc] sm:$0xf]
      %v271 = vld [vmem:[%s247 + $0x10] sm:$0xf]
      %v272 = vld [vmem:[%s247 + $0x14] sm:$0xf]
      %v273 = vld [vmem:[%s247 + $0x18] sm:$0xf]
      %v274 = vld [vmem:[%s247 + $0x1c] sm:$0xf]
      %v275 = vld [vmem:[%s247 + $0x20] sm:$0xf]
      %v276 = vld [vmem:[%s247 + $0x24] sm:$0xf]
      %v277 = vld [vmem:[%s247 + $0x28] sm:$0xf]
      %v278 = vld [vmem:[%s247 + $0x2c] sm:$0xf]
      %v279 = vld [vmem:[%s247 + $0x30] sm:$0xf]
      %v280 = vld [vmem:[%s247 + $0x34] sm:$0xf]
      %v281 = vld [vmem:[%s247 + $0x38] sm:$0xf]
      %v282 = vld [vmem:[%s247 + $0x3c] sm:$0xf]
      %v283 = vld [vmem:[%s247 + $0x40] sm:$0xf]
      %v284 = vld [vmem:[%s247 + $0x44] sm:$0xf]
      %v285 = vld [vmem:[%s247 + $0x48] sm:$0xf]
      %v286 = vld [vmem:[%s247 + $0x4c] sm:$0xf]
      %v287 = vld [vmem:[%s247 + $0x50] sm:$0xf]
      %v288 = vld [vmem:[%s247 + $0x54] sm:$0xf]
      %v289 = vld [vmem:[%s247 + $0x58] sm:$0xf]
      %v290 = vld [vmem:[%s247 + $0x5c] sm:$0xf]
      %v291 = vld [vmem:[%s247 + $0x60] sm:$0xf]
      %v292 = vld [vmem:[%s247 + $0x64] sm:$0xf]
      %v293 = vld [vmem:[%s247 + $0x68] sm:$0xf]
      %v294 = vld [vmem:[%s247 + $0x6c] sm:$0xf]
      %v295 = vld [vmem:[%s247 + $0x70] sm:$0xf]
      %v296 = vld [vmem:[%s247 + $0x74] sm:$0xf]
      %v297 = vld [vmem:[%s247 + $0x78] sm:$0xf]
      %v298 = vld [vmem:[%s247 + $0x7c] sm:$0xf]
      %v300 = vunpack.c.l.b16 %v266
      %v301 = vunpack.c.h.b16 %v266
      %v302 = vpack.c.b16 %v300, %v300
      %v303 = vpack.c.b16 %v301, %v301
      %v338 = vunpack.c.l.b16 %v267
      %v339 = vunpack.c.l.b16 %v268
      %v340 = vunpack.c.l.b16 %v269
      %v341 = vunpack.c.l.b16 %v270
      %v342 = vunpack.c.l.b16 %v271
      %v343 = vunpack.c.l.b16 %v272
      %v344 = vunpack.c.l.b16 %v273
      %v345 = vunpack.c.l.b16 %v274
      %v346 = vunpack.c.l.b16 %v275
      %v347 = vunpack.c.l.b16 %v276
      %v348 = vunpack.c.l.b16 %v277
      %v349 = vunpack.c.l.b16 %v278
      %v350 = vunpack.c.l.b16 %v279
      %v351 = vunpack.c.l.b16 %v280
      %v352 = vunpack.c.l.b16 %v281
      %v353 = vunpack.c.l.b16 %v282
      %v354 = vunpack.c.l.b16 %v283
      %v355 = vunpack.c.l.b16 %v284
      %v356 = vunpack.c.l.b16 %v285
      %v357 = vunpack.c.l.b16 %v286
      %v358 = vunpack.c.l.b16 %v287
      %v359 = vunpack.c.l.b16 %v288
      %v360 = vunpack.c.l.b16 %v289
      %v361 = vunpack.c.l.b16 %v290
      %v362 = vunpack.c.l.b16 %v291
      %v363 = vunpack.c.l.b16 %v292
      %v364 = vunpack.c.l.b16 %v293
      %v365 = vunpack.c.l.b16 %v294
      %v366 = vunpack.c.l.b16 %v295
      %v367 = vunpack.c.l.b16 %v296
      %v368 = vunpack.c.l.b16 %v297
      %v369 = vunpack.c.l.b16 %v298
      %v370 = vpack.c.b16 %v339, %v338
      %v371 = vpack.c.b16 %v341, %v340
      %v372 = vpack.c.b16 %v343, %v342
      %v373 = vpack.c.b16 %v345, %v344
      %v374 = vpack.c.b16 %v347, %v346
      %v375 = vpack.c.b16 %v349, %v348
      %v376 = vpack.c.b16 %v351, %v350
      %v377 = vpack.c.b16 %v353, %v352
      %v378 = vpack.c.b16 %v355, %v354
      %v379 = vpack.c.b16 %v357, %v356
      %v380 = vpack.c.b16 %v359, %v358
      %v381 = vpack.c.b16 %v361, %v360
      %v382 = vpack.c.b16 %v363, %v362
      %v383 = vpack.c.b16 %v365, %v364
      %v384 = vpack.c.b16 %v367, %v366
      %v385 = vpack.c.b16 %v369, %v368
      %402 = vmatpush.bf16.msra.mxu0 %v377
      %403 = vmatpush.bf16.msra.mxu0 %v376
      %404 = vmatpush.bf16.msra.mxu0 %v375
      %405 = vmatpush.bf16.msra.mxu0 %v374
      %406 = vmatpush.bf16.msra.mxu0 %v373
      %407 = vmatpush.bf16.msra.mxu0 %v372
      %408 = vmatpush.bf16.msra.mxu0 %v371
      %409 = vmatpush.bf16.msra.mxu0 %v370
      %410 = vmatmul.bf16.gmra.mxu0 %v302
      %v411 = vpop.f32.mrf.mxu0
      %v412 = vadd.f32 0.0, %v411
      %v413 = vpop.f32.mrf.mxu0
      %414 = vdwg.mxu0
      %415 = vmatpush.bf16.msra.mxu0 %v385
      %416 = vmatpush.bf16.msra.mxu0 %v384
      %417 = vmatpush.bf16.msra.mxu0 %v383
      %418 = vmatpush.bf16.msra.mxu0 %v382
      %419 = vmatpush.bf16.msra.mxu0 %v381
      %420 = vmatpush.bf16.msra.mxu0 %v380
      %421 = vmatpush.bf16.msra.mxu0 %v379
      %422 = vmatpush.bf16.msra.mxu0 %v378
      %423 = vmatmul.bf16.gmra.mxu0 %v303
      %v424 = vpop.f32.mrf.mxu0
      %v425 = vadd.f32 %v412, %v424
      %v426 = vpop.f32.mrf.mxu0
      %427 = vdwg.mxu0
      %v428 = vadd.f32 %v265, %v425
      %vm429 = vcmask 523264
      %430 = vst.msk [vmem:[#allocation2] sm:$0xff] %vm429, %v428
      %p431 = scmp.eq.s32.totalorder %s21, 2
      // Predicated region
      $region37: #{model_forward.6} parent=31 // pred_check
        %p432 = pneg %p431
      $region38: #{model_forward.6} parent=31 // pred_check_branch
        %434 = sbr.rel (%p432) target = $region40
      $region39: #{model_forward.6} parent=31 // pred_region
        %v435 = vld [vmem:[#allocation2] sm:$0xff]
        %v436 = vld [vmem:[%s251] sm:$0x1]
        %v438 = vperm.slane %v436, 0
        %v440 = vadd.f32 %v435, %v438
        %441 = vst.msk [vmem:[%s258] sm:$0xff] %vm429, %v440
      $region40: #{model_forward.6} parent=31 // pred_fallthru
        _
      %p442 = scmp.lt.s32.totalorder %s19, 1
      %s443 = scalar_select %p442, %s19, 1
      %p444 = scmp.lt.s32.totalorder %s20, 0
      %s445 = scalar_select %p444, %s20, 0
      %s446 = sadd.s32 %s445, %s443
      %s447 = smul.addr %s446, 8
      %s448 = scalar_lea.vmem %s3, %s447
      // Predicated region
      $region41: #{model_forward.6} parent=31 // pred_check
        %p449 = pneg %p135
      $region42: #{model_forward.6} parent=31 // pred_check_branch
        %451 = sbr.rel (%p449) target = $region44
      $region43: #{model_forward.6} parent=31 // pred_region
        _
      $region44: #{model_forward.6} parent=31 // pred_fallthru
        _
    $region32: #{model_forward.6} parent=5 // pred_fallthru
      _
    %p452 = scmp.le.s32.totalorder 2, %s9
    // Predicated region
    $region45: #{model_forward.6} parent=5 // pred_check
      %p453 = pneg %p452
    $region46: #{model_forward.6} parent=5 // pred_check_branch
      %455 = sbr.rel (%p453) target = $region48
    $region47: #{model_forward.6} parent=5 // pred_region
      %s456 = ssub.s32 %s9, 2
      // Predicated region
      $region49: #{model_forward.6} parent=47 // pred_check
        %p457 = pneg %p141
      $region50: #{model_forward.6} parent=47 // pred_check_branch
        %459 = sbr.rel (%p457) target = $region52
      $region51: #{model_forward.6} parent=47 // pred_region
        %p460 = scmp.lt.s32.totalorder %s22, 1
        %s461 = scalar_select %p460, %s22, 1
        %p462 = scmp.lt.s32.totalorder %s23, 0
        %s463 = scalar_select %p462, %s23, 0
        %s464 = sadd.s32 %s463, %s461
        %s465 = smul.addr %s464, 8
        %s466 = scalar_lea.vmem %s3, %s465
      $region52: #{model_forward.6} parent=47 // pred_fallthru
        _
    $region48: #{model_forward.6} parent=5 // pred_fallthru
      _
  $region6: #{model_forward.6} parent=0 // loop_footer
    %s13 = sadd.s32 1, %s9
  $region7: #{model_forward.6} parent=0 // loop_footer_branch
    %8 = sbr.rel target = $region3
  $region8: #{model_forward.6} parent=0 // loop_exit
    _

// kernel: model_forward.7
$region0: #{model_forward.7}
  #allocation0 [shape = 'u32[]', space=smem, size = 0x4, offset = 0x4, fixed_abs, tag = 'smem constant byte address 0x4 - core index']
  #allocation1 [shape = 'u32[72,128]{1,0:T(1,128)}', space=vmem, size = 0x9000, scoped, tag = 'internal scratch']
  %s0 = inlined_call_operand.vmem [shape: bf16[4,8,64], index: 0, kind: input, shape index: {}]
  %s1 = inlined_call_operand.vmem [shape: f32[1,64], index: 1, kind: input, shape index: {}]
  %s2 = inlined_call_operand.vmem [shape: f32[1,64], index: 2, kind: input, shape index: {}]
  %s3 = inlined_call_operand.vmem [shape: bf16[64,192], index: 3, kind: input, shape index: {}]
  %s4 = inlined_call_operand.vmem [shape: f32[1,192], index: 4, kind: input, shape index: {}]
  %s5 = inlined_call_operand.vmem [shape: bf16[64,64], index: 5, kind: input, shape index: {}]
  %s6 = inlined_call_operand.vmem [shape: f32[1,64], index: 6, kind: input, shape index: {}]
  %s7 = inlined_call_operand.vmem [shape: bf16[4,8,64], index: 7, kind: output, shape index: {}]
  %s8 = sld [smem:[#allocation0]]
  $region61: #{model_forward.7} parent=0
    _
  %s10 = ssub.s32 1, %s8
  %s11 = scalar_select 0, %s10, %s8
  loop: start=0, step=1, limit=6
  $region2: #{model_forward.7} parent=0 // loop_pre_header
    _
  $region3: #{model_forward.7} parent=0 // loop_header
    %s13 = sphi 0, %s17
    %p14 = scmp.ge.s32.totalorder %s13, 6
    %s23 = sphi 0, %s25
    %s26 = sphi 0, %s23
    %s27 = sphi 0, %s26
    %s43 = sphi 0, %s27
    %s47 = sphi 0, %s47
    %s49 = sphi 0, %s47
    %s50 = sphi 0, %s49
    %s64 = sphi 0, %s50
    %s68 = sphi 0, %s68
    %s70 = sphi 0, %s68
    %s71 = sphi 0, %s70
    %s85 = sphi 0, %s71
    %s89 = sphi 0, %s89
    %s91 = sphi 0, %s89
    %s92 = sphi 0, %s91
    %s106 = sphi 0, %s92
    %s110 = sphi 0, %s110
    %s112 = sphi 0, %s110
    %s113 = sphi 0, %s112
    %s127 = sphi 0, %s113
    %s131 = sphi 0, %s131
    %s133 = sphi 0, %s131
    %s134 = sphi 0, %s133
    %s148 = sphi 0, %s134
    %s152 = sphi 0, %s152
    %s154 = sphi 0, %s152
    %s155 = sphi 0, %s154
    %s169 = sphi 0, %s155
    %s175 = sphi 0, %s177
    %s178 = sphi 0, %s175
    %s179 = sphi 0, %s178
    %s195 = sphi 0, %s179
  $region4: #{model_forward.7} parent=0 // loop_header_branch
    %16 = sbr.rel (%p14) target = $region8
  $region5: #{model_forward.7} parent=0 // loop_body
    %s18 = ssub.s32 %s13, 1
    %s19 = ssub.s32 %s13, 2
    %s20 = sadd.s32 %s13, 1
    %s21 = ssub.s32 %s13, %s20
    %p22 = scmp.eq.s32.totalorder %s21, 0
    %s24 = sadd.s32 %s23, 1
    %s25 = scalar_select %p22, %s23, %s24
    %p28 = pneg %p22
    %p29 = scmp.eq.s32.totalorder %s13, 3
    %p30 = por %p28, %p29
    %p31 = scmp.ne.s32.totalorder %s23, %s26
    %p32 = scmp.eq.s32.totalorder %s13, 0
    %p33 = por %p31, %p32
    %p34 = scmp.ne.s32.totalorder %s23, %s26
    %p35 = scmp.eq.s32.totalorder %s18, 3
    %p36 = por %p34, %p35
    %p37 = scmp.ne.s32.totalorder %s26, %s27
    %p38 = scmp.eq.s32.totalorder %s18, 0
    %p39 = por %p37, %p38
    %p40 = scmp.ne.s32.totalorder %s26, %s27
    %p41 = scmp.eq.s32.totalorder %s19, 3
    %p42 = por %p40, %p41
    %p44 = scmp.ne.s32.totalorder %s27, %s43
    %p45 = scmp.eq.s32.totalorder %s19, 0
    %p46 = por %p44, %p45
    %s48 = sadd.s32 %s47, 1
    %p51 = scmp.eq.s32.totalorder %s13, 3
    %p52 = scmp.ne.s32.totalorder %s47, %s49
    %p53 = scmp.eq.s32.totalorder %s13, 0
    %p54 = por %p52, %p53
    %p55 = scmp.ne.s32.totalorder %s47, %s49
    %p56 = scmp.eq.s32.totalorder %s18, 3
    %p57 = por %p55, %p56
    %p58 = scmp.ne.s32.totalorder %s49, %s50
    %p59 = scmp.eq.s32.totalorder %s18, 0
    %p60 = por %p58, %p59
    %p61 = scmp.ne.s32.totalorder %s49, %s50
    %p62 = scmp.eq.s32.totalorder %s19, 3
    %p63 = por %p61, %p62
    %p65 = scmp.ne.s32.totalorder %s50, %s64
    %p66 = scmp.eq.s32.totalorder %s19, 0
    %p67 = por %p65, %p66
    %s69 = sadd.s32 %s68, 1
    %p72 = scmp.eq.s32.totalorder %s13, 3
    %p73 = scmp.ne.s32.totalorder %s68, %s70
    %p74 = scmp.eq.s32.totalorder %s13, 0
    %p75 = por %p73, %p74
    %p76 = scmp.ne.s32.totalorder %s68, %s70
    %p77 = scmp.eq.s32.totalorder %s18, 3
    %p78 = por %p76, %p77
    %p79 = scmp.ne.s32.totalorder %s70, %s71
    %p80 = scmp.eq.s32.totalorder %s18, 0
    %p81 = por %p79, %p80
    %p82 = scmp.ne.s32.totalorder %s70, %s71
    %p83 = scmp.eq.s32.totalorder %s19, 3
    %p84 = por %p82, %p83
    %p86 = scmp.ne.s32.totalorder %s71, %s85
    %p87 = scmp.eq.s32.totalorder %s19, 0
    %p88 = por %p86, %p87
    %s90 = sadd.s32 %s89, 1
    %p93 = scmp.eq.s32.totalorder %s13, 3
    %p94 = scmp.ne.s32.totalorder %s89, %s91
    %p95 = scmp.eq.s32.totalorder %s13, 0
    %p96 = por %p94, %p95
    %p97 = scmp.ne.s32.totalorder %s89, %s91
    %p98 = scmp.eq.s32.totalorder %s18, 3
    %p99 = por %p97, %p98
    %p100 = scmp.ne.s32.totalorder %s91, %s92
    %p101 = scmp.eq.s32.totalorder %s18, 0
    %p102 = por %p100, %p101
    %p103 = scmp.ne.s32.totalorder %s91, %s92
    %p104 = scmp.eq.s32.totalorder %s19, 3
    %p105 = por %p103, %p104
    %p107 = scmp.ne.s32.totalorder %s92, %s106
    %p108 = scmp.eq.s32.totalorder %s19, 0
    %p109 = por %p107, %p108
    %s111 = sadd.s32 %s110, 1
    %p114 = scmp.eq.s32.totalorder %s13, 3
    %p115 = scmp.ne.s32.totalorder %s110, %s112
    %p116 = scmp.eq.s32.totalorder %s13, 0
    %p117 = por %p115, %p116
    %p118 = scmp.ne.s32.totalorder %s110, %s112
    %p119 = scmp.eq.s32.totalorder %s18, 3
    %p120 = por %p118, %p119
    %p121 = scmp.ne.s32.totalorder %s112, %s113
    %p122 = scmp.eq.s32.totalorder %s18, 0
    %p123 = por %p121, %p122
    %p124 = scmp.ne.s32.totalorder %s112, %s113
    %p125 = scmp.eq.s32.totalorder %s19, 3
    %p126 = por %p124, %p125
    %p128 = scmp.ne.s32.totalorder %s113, %s127
    %p129 = scmp.eq.s32.totalorder %s19, 0
    %p130 = por %p128, %p129
    %s132 = sadd.s32 %s131, 1
    %p135 = scmp.eq.s32.totalorder %s13, 3
    %p136 = scmp.ne.s32.totalorder %s131, %s133
    %p137 = scmp.eq.s32.totalorder %s13, 0
    %p138 = por %p136, %p137
    %p139 = scmp.ne.s32.totalorder %s131, %s133
    %p140 = scmp.eq.s32.totalorder %s18, 3
    %p141 = por %p139, %p140
    %p142 = scmp.ne.s32.totalorder %s133, %s134
    %p143 = scmp.eq.s32.totalorder %s18, 0
    %p144 = por %p142, %p143
    %p145 = scmp.ne.s32.totalorder %s133, %s134
    %p146 = scmp.eq.s32.totalorder %s19, 3
    %p147 = por %p145, %p146
    %p149 = scmp.ne.s32.totalorder %s134, %s148
    %p150 = scmp.eq.s32.totalorder %s19, 0
    %p151 = por %p149, %p150
    %s153 = sadd.s32 %s152, 1
    %p156 = scmp.eq.s32.totalorder %s13, 3
    %p157 = scmp.ne.s32.totalorder %s152, %s154
    %p158 = scmp.eq.s32.totalorder %s13, 0
    %p159 = por %p157, %p158
    %p160 = scmp.ne.s32.totalorder %s152, %s154
    %p161 = scmp.eq.s32.totalorder %s18, 3
    %p162 = por %p160, %p161
    %p163 = scmp.ne.s32.totalorder %s154, %s155
    %p164 = scmp.eq.s32.totalorder %s18, 0
    %p165 = por %p163, %p164
    %p166 = scmp.ne.s32.totalorder %s154, %s155
    %p167 = scmp.eq.s32.totalorder %s19, 3
    %p168 = por %p166, %p167
    %p170 = scmp.ne.s32.totalorder %s155, %s169
    %p171 = scmp.eq.s32.totalorder %s19, 0
    %p172 = por %p170, %p171
    %s173 = ssub.s32 %s13, %s20
    %p174 = scmp.eq.s32.totalorder %s173, 0
    %s176 = sadd.s32 %s175, 1
    %s177 = scalar_select %p174, %s175, %s176
    %p180 = pneg %p174
    %p181 = scmp.eq.s32.totalorder %s13, 3
    %p182 = por %p180, %p181
    %p183 = scmp.ne.s32.totalorder %s175, %s178
    %p184 = scmp.eq.s32.totalorder %s13, 0
    %p185 = por %p183, %p184
    %p186 = scmp.ne.s32.totalorder %s175, %s178
    %p187 = scmp.eq.s32.totalorder %s18, 3
    %p188 = por %p186, %p187
    %p189 = scmp.ne.s32.totalorder %s178, %s179
    %p190 = scmp.eq.s32.totalorder %s18, 0
    %p191 = por %p189, %p190
    %p192 = scmp.ne.s32.totalorder %s178, %s179
    %p193 = scmp.eq.s32.totalorder %s19, 3
    %p194 = por %p192, %p193
    %p196 = scmp.ne.s32.totalorder %s179, %s195
    %p197 = scmp.eq.s32.totalorder %s19, 0
    %p198 = por %p196, %p197
    %p199 = scmp.le.s32.totalorder 1, %s13
    %p200 = scmp.lt.s32.totalorder %s13, 5
    %p201 = pnand %p199, %p200
    %p202 = pneg %p201
    // Predicated region
    $region9: #{model_forward.7} parent=5 // pred_check
      _
    $region10: #{model_forward.7} parent=5 // pred_check_branch
      %204 = sbr.rel (%p201) target = $region12
    $region11: #{model_forward.7} parent=5 // pred_region
      %s205 = ssub.s32 %s13, 1
      // Predicated region
      $region13: #{model_forward.7} parent=11 // pred_check
        %p206 = pneg %p60
      $region14: #{model_forward.7} parent=11 // pred_check_branch
        %208 = sbr.rel (%p206) target = $region16
      $region15: #{model_forward.7} parent=11 // pred_region
        _
      $region16: #{model_forward.7} parent=11 // pred_fallthru
        _
      // Predicated region
      $region17: #{model_forward.7} parent=11 // pred_check
        %p209 = pneg %p81
      $region18: #{model_forward.7} parent=11 // pred_check_branch
        %211 = sbr.rel (%p209) target = $region20
      $region19: #{model_forward.7} parent=11 // pred_region
        _
      $region20: #{model_forward.7} parent=11 // pred_fallthru
        _
      // Predicated region
      $region21: #{model_forward.7} parent=11 // pred_check
        %p212 = pneg %p102
      $region22: #{model_forward.7} parent=11 // pred_check_branch
        %214 = sbr.rel (%p212) target = $region24
      $region23: #{model_forward.7} parent=11 // pred_region
        _
      $region24: #{model_forward.7} parent=11 // pred_fallthru
        _
      // Predicated region
      $region25: #{model_forward.7} parent=11 // pred_check
        %p215 = pneg %p123
      $region26: #{model_forward.7} parent=11 // pred_check_branch
        %217 = sbr.rel (%p215) target = $region28
      $region27: #{model_forward.7} parent=11 // pred_region
        _
      $region28: #{model_forward.7} parent=11 // pred_fallthru
        _
      // Predicated region
      $region29: #{model_forward.7} parent=11 // pred_check
        %p218 = pneg %p144
      $region30: #{model_forward.7} parent=11 // pred_check_branch
        %220 = sbr.rel (%p218) target = $region32
      $region31: #{model_forward.7} parent=11 // pred_region
        _
      $region32: #{model_forward.7} parent=11 // pred_fallthru
        _
      // Predicated region
      $region33: #{model_forward.7} parent=11 // pred_check
        %p221 = pneg %p165
      $region34: #{model_forward.7} parent=11 // pred_check_branch
        %223 = sbr.rel (%p221) target = $region36
      $region35: #{model_forward.7} parent=11 // pred_region
        _
      $region36: #{model_forward.7} parent=11 // pred_fallthru
        _
    $region12: #{model_forward.7} parent=5 // pred_fallthru
      _
    %p224 = scmp.lt.s32.totalorder %s13, 4
    // Predicated region
    $region37: #{model_forward.7} parent=5 // pred_check
      %p225 = pneg %p224
    $region38: #{model_forward.7} parent=5 // pred_check_branch
      %227 = sbr.rel (%p225) target = $region40
    $region39: #{model_forward.7} parent=5 // pred_region
      // Predicated region
      $region41: #{model_forward.7} parent=39 // pred_check
        %p228 = pneg %p33
      $region42: #{model_forward.7} parent=39 // pred_check_branch
        %230 = sbr.rel (%p228) target = $region44
      $region43: #{model_forward.7} parent=39 // pred_region
        %p231 = scmp.lt.s32.totalorder %s13, 3
        %s232 = scalar_select %p231, %s13, 3
        %s233 = smul.addr %s232, 4
        %s234 = scalar_lea.vmem %s0, %s233
      $region44: #{model_forward.7} parent=39 // pred_fallthru
        _
    $region40: #{model_forward.7} parent=5 // pred_fallthru
      _
    %p235 = scmp.le.s32.totalorder 1, %s13
    %p236 = scmp.lt.s32.totalorder %s13, 5
    %p237 = pnand %p235, %p236
    %p238 = pneg %p237
    // Predicated region
    $region45: #{model_forward.7} parent=5 // pred_check
      _
    $region46: #{model_forward.7} parent=5 // pred_check_branch
      %240 = sbr.rel (%p237) target = $region48
    $region47: #{model_forward.7} parent=5 // pred_region
      %s241 = ssub.s32 %s13, 1
      %p242 = scmp.lt.s32.totalorder %s18, 3
      %s243 = scalar_select %p242, %s18, 3
      %s244 = smul.addr %s243, 4
      %s245 = scalar_lea.vmem %s0, %s244
      %p246 = pneg %p39
      %p247 = pneg %p36
      %p248 = pneg %p60
      %p249 = pneg %p57
      %p250 = pneg %p81
      %p251 = pneg %p78
      %p252 = pneg %p102
      %p253 = pneg %p99
      %p254 = pneg %p123
      %p255 = pneg %p120
      %p256 = pneg %p144
      %p257 = pneg %p141
      %p258 = pneg %p165
      %p259 = pneg %p162
      %p260 = pneg %p191
      %p261 = pneg %p188
      %p262 = scmp.lt.s32.totalorder %s18, 3
      %s263 = scalar_select %p262, %s18, 3
      %s264 = smul.addr %s263, 4
      %s265 = scalar_lea.vmem %s7, %s264
      %p266 = scmp.lt.s32.totalorder %s18, 3
      %s267 = scalar_select %p266, %s18, 3
      %s268 = smul.addr %s267, 4
      %s269 = scalar_lea.vmem %s0, %s268
      %p270 = scmp.lt.s32.totalorder %s18, 3
      %s271 = scalar_select %p270, %s18, 3
      %s272 = smul.addr %s271, 4
      %s273 = scalar_lea.vmem %s7, %s272
      %v275 = vld [vmem:[%s269] sm:$0xf]
      %v276 = vunpack.c.l.bf16 %v275
      %vm277 = vcmask 523264
      %v278 = vsel %vm277, %v276, 0.0
      %279 = vadd.xlane.f32.xlu0 %v278
      %v280 = vpop.xlane.xlu0 %279
      %v281 = vrcp.pop 64.0
      %v282 = vmul.f32 64.0, %v281
      %v283 = vsub.f32 1.0, %v282
      %v284 = vmul.f32 %v281, %v283
      %v285 = vadd.f32 %v281, %v284
      %vm286 = vweird.f32 %v281
      %v287 = vsel %vm286, %v281, %v285
      %v288 = vmul.f32 %v280, %v287
      %v289 = vsub.f32 %v276, %v288
      %v290 = vmul.f32 %v289, %v289
      %v291 = vsel %vm277, %v290, 0.0
      %292 = vadd.xlane.f32.xlu0 %v291
      %v293 = vpop.xlane.xlu0 %292
      %v294 = vmul.f32 %v293, %v287
      %v295 = vadd.f32 %v294, 1e-06
      %v296 = vrsqrt.pop %v295
      %v297 = vmul.f32 %v296, %v295
      %v298 = vmul.f32 %v297, %v296
      %v299 = vmul.f32 0.5, %v298
      %v300 = vsub.f32 1.5, %v299
      %v301 = vmul.f32 %v296, %v300
      %vm302 = vweird.f32 %v295
      %vm303 = vweird.f32 %v296
      %vm304 = vmor %vm302, %vm303
      %v305 = vsel %vm304, %v296, %v301
      %v306 = vmul.f32 %v289, %v305
      %v307 = vld [vmem:[%s1] sm:$0x1]
      %v309 = vperm.slane %v307, 0
      %v311 = vmul.f32 %v306, %v309
      %v312 = vld [vmem:[%s2] sm:$0x1]
      %v314 = vperm.slane %v312, 0
      %v316 = vadd.f32 %v311, %v314
      %v317 = vpack.c.bf16 %v316, %v316
      %v318 = vld [vmem:[%s3] sm:$0xff]
      %v319 = vld [vmem:[%s3 + $0x8] sm:$0xff]
      %v320 = vld [vmem:[%s3 + $0x10] sm:$0xff]
      %v321 = vld [vmem:[%s3 + $0x18] sm:$0xff]
      %v322 = vld [vmem:[%s3 + $0x20] sm:$0xff]
      %v323 = vld [vmem:[%s3 + $0x28] sm:$0xff]
      %v324 = vld [vmem:[%s3 + $0x30] sm:$0xff]
      %v325 = vld [vmem:[%s3 + $0x38] sm:$0xff]
      %v326 = vld [vmem:[%s4] sm:$0x3]
      %v328 = vperm.slane %v326, 0
      %v329 = vperm.slane %v326, 1
      %v340 = vunpack.c.l.b16 %v318
      %v341 = vunpack.c.h.b16 %v318
      %v342 = vunpack.c.l.b16 %v319
      %v343 = vunpack.c.h.b16 %v319
      %v344 = vunpack.c.l.b16 %v320
      %v345 = vunpack.c.h.b16 %v320
      %v346 = vunpack.c.l.b16 %v321
      %v347 = vunpack.c.h.b16 %v321
      %v348 = vunpack.c.l.b16 %v322
      %v349 = vunpack.c.h.b16 %v322
      %v350 = vunpack.c.l.b16 %v323
      %v351 = vunpack.c.h.b16 %v323
      %v352 = vunpack.c.l.b16 %v324
      %v353 = vunpack.c.h.b16 %v324
      %v354 = vunpack.c.l.b16 %v325
      %v355 = vunpack.c.h.b16 %v325
      %v356 = vpack.c.b16 %v342, %v340
      %v357 = vpack.c.b16 %v343, %v341
      %v358 = vpack.c.b16 %v346, %v344
      %v359 = vpack.c.b16 %v347, %v345
      %v360 = vpack.c.b16 %v350, %v348
      %v361 = vpack.c.b16 %v351, %v349
      %v362 = vpack.c.b16 %v354, %v352
      %v363 = vpack.c.b16 %v355, %v353
      %v373 = vsel %vm277, %v317, 0
      %375 = vmatpush.bf16.msra.mxu0 0
      %376 = vmatpush.bf16.msra.mxu0 0
      %377 = vmatpush.bf16.msra.mxu0 0
      %378 = vmatpush.bf16.msra.mxu0 0
      %379 = vmatpush.bf16.msra.mxu0 %v362
      %380 = vmatpush.bf16.msra.mxu0 %v360
      %381 = vmatpush.bf16.msra.mxu0 %v358
      %382 = vmatpush.bf16.msra.mxu0 %v356
      %383 = vmatmul.bf16.gmra.mxu0 %v373
      %v384 = vpop.f32.mrf.mxu0
      %v385 = vadd.f32 %v328, %v384
      %v386 = vpop.f32.mrf.mxu0
      %387 = vdwg.mxu0
      %388 = vmatpush.bf16.msra.mxu0 0
      %389 = vmatpush.bf16.msra.mxu0 0
      %390 = vmatpush.bf16.msra.mxu0 0
      %391 = vmatpush.bf16.msra.mxu0 0
      %392 = vmatpush.bf16.msra.mxu0 %v363
      %393 = vmatpush.bf16.msra.mxu0 %v361
      %394 = vmatpush.bf16.msra.mxu0 %v359
      %395 = vmatpush.bf16.msra.mxu0 %v357
      %396 = vmatmul.bf16.gmra.mxu0 %v373
      %v397 = vpop.f32.mrf.mxu0
      %v398 = vadd.f32 %v329, %v397
      %v399 = vpop.f32.mrf.mxu0
      %400 = vdwg.mxu0
      %v401 = vpack.c.bf16 %v398, %v385
      %v402 = vlaneseq
      %v403 = vand.u32 %v402, 127
      %vm404 = vcmp.lt.s32.totalorder %v403, 5
      %v405 = vld [vmem:[%s6] sm:$0x1]
      %v407 = vperm.slane %v405, 0
      %v409 = vadd.f32 %v276, %v407
      %v411 = vunpack.c.l.b16 %v401
      %v412 = vpack.c.b16 %v411, %v411
      %413 = vrot.lane.b32.xlu0 %v412, 64
      %v414 = vpop.permute.xlu0 %413
      %vm415 = vcmask 130048
      %v417 = vsel %vm415, %v401, 0
      %v420 = vsel %vm415, %v414, 0
      %422 = vmatpush.bf16.xpose.msra.mxu0 0
      %423 = vmatpush.bf16.xpose.msra.mxu0 0
      %424 = vmatpush.bf16.xpose.msra.mxu0 0
      %425 = vmatpush.bf16.xpose.msra.mxu0 0
      %426 = vmatpush.bf16.xpose.msra.mxu0 0
      %427 = vmatpush.bf16.xpose.msra.mxu0 0
      %428 = vmatpush.bf16.xpose.msra.mxu0 0
      %429 = vmatpush.bf16.xpose.msra.mxu0 %v420
      %430 = vmatmul.bf16.gmra.mxu0 %v417
      %v431 = vpop.f32.mrf.mxu0
      %v432 = vadd.f32 0.0, %v431
      %v433 = vpop.f32.mrf.mxu0
      %434 = vdwg.mxu0
      %v435 = vsel %vm404, %v432, -1e+30
      %vm436 = vcmask 64512
      %v437 = vsel %vm436, %v435, -inf
      %438 = vmax.xlane.f32.xlu0 %v437
      %v439 = vpop.xlane.xlu0 %438
      %v440 = vsub.f32 %v435, %v439
      %v441 = vmul.f32 %v440, 1.442695
      %v442 = vpow.pop %v441
      %v443 = vsel %vm436, %v442, 0.0
      %444 = vadd.xlane.f32.xlu0 %v443
      %v445 = vpop.xlane.xlu0 %444
      %v446 = vrcp.pop %v445
      %v447 = vpack.c.bf16 %v442, %v442
      %v448 = vunpack.c.h.b16 %v401
      %v449 = vpack.c.b16 %v448, %v448
      %v451 = vsel %vm436, %v447, 0
      %vm453 = vcmask 1043456
      %v455 = vsel %vm453, %v449, 0
      %457 = vmatpush.bf16.msra.mxu0 0
      %458 = vmatpush.bf16.msra.mxu0 0
      %459 = vmatpush.bf16.msra.mxu0 0
      %460 = vmatpush.bf16.msra.mxu0 0
      %461 = vmatpush.bf16.msra.mxu0 0
      %462 = vmatpush.bf16.msra.mxu0 0
      %463 = vmatpush.bf16.msra.mxu0 0
      %464 = vmatpush.bf16.msra.mxu0 %v455
      %465 = vmatmul.bf16.gmra.mxu0 %v451
      %v466 = vpop.f32.mrf.mxu0
      %v467 = vadd.f32 0.0, %v466
      %v468 = vpop.f32.mrf.mxu0
      %469 = vdwg.mxu0
      %v470 = vmul.f32 %v467, %v446
      %v471 = vpack.c.bf16 %v470, %v470
      %v472 = vld [vmem:[%s5] sm:$0xf]
      %v473 = vld [vmem:[%s5 + $0x4] sm:$0xf]
      %v476 = vunpack.c.l.b16 %v472
      %v477 = vunpack.c.l.b16 %v473
      %v478 = vpack.c.b16 %v477, %v476
      %v481 = vsel %vm415, %v471, 0
      %483 = vmatpush.bf16.msra.mxu0 0
      %484 = vmatpush.bf16.msra.mxu0 0
      %485 = vmatpush.bf16.msra.mxu0 0
      %486 = vmatpush.bf16.msra.mxu0 0
      %487 = vmatpush.bf16.msra.mxu0 0
      %488 = vmatpush.bf16.msra.mxu0 0
      %489 = vmatpush.bf16.msra.mxu0 0
      %490 = vmatpush.bf16.msra.mxu0 %v478
      %491 = vmatmul.bf16.gmra.mxu0 %v481
      %v492 = vpop.f32.mrf.mxu0
      %v493 = vadd.f32 0.0, %v492
      %v494 = vpop.f32.mrf.mxu0
      %495 = vdwg.mxu0
      %v496 = vadd.f32 %v409, %v493
      %497 = vrot.lane.b32.xlu0 %v412, 112
      %v498 = vpop.permute.xlu0 %497
      %499 = vrot.lane.b32.xlu0 %v412, 48
      %v500 = vpop.permute.xlu0 %499
      %v502 = vsel %vm415, %v498, 0
      %v505 = vsel %vm415, %v500, 0
      %507 = vmatpush.bf16.xpose.msra.mxu0 0
      %508 = vmatpush.bf16.xpose.msra.mxu0 0
      %509 = vmatpush.bf16.xpose.msra.mxu0 0
      %510 = vmatpush.bf16.xpose.msra.mxu0 0
      %511 = vmatpush.bf16.xpose.msra.mxu0 0
      %512 = vmatpush.bf16.xpose.msra.mxu0 0
      %513 = vmatpush.bf16.xpose.msra.mxu0 0
      %514 = vmatpush.bf16.xpose.msra.mxu0 %v505
      %515 = vmatmul.bf16.gmra.mxu0 %v502
      %v516 = vpop.f32.mrf.mxu0
      %v517 = vadd.f32 0.0, %v516
      %v518 = vpop.f32.mrf.mxu0
      %519 = vdwg.mxu0
      %v520 = vsel %vm404, %v517, -1e+30
      %v521 = vsel %vm436, %v520, -inf
      %522 = vmax.xlane.f32.xlu0 %v521
      %v523 = vpop.xlane.xlu0 %522
      %v524 = vsub.f32 %v520, %v523
      %v525 = vmul.f32 %v524, 1.442695
      %v526 = vpow.pop %v525
      %v527 = vsel %vm436, %v526, 0.0
      %528 = vadd.xlane.f32.xlu0 %v527
      %v529 = vpop.xlane.xlu0 %528
      %v530 = vrcp.pop %v529
      %v531 = vpack.c.bf16 %v526, %v526
      %532 = vrot.lane.b32.xlu0 %v449, 112
      %v533 = vpop.permute.xlu0 %532
      %v535 = vsel %vm436, %v531, 0
      %v538 = vsel %vm453, %v533, 0
      %540 = vmatpush.bf16.msra.mxu0 0
      %541 = vmatpush.bf16.msra.mxu0 0
      %542 = vmatpush.bf16.msra.mxu0 0
      %543 = vmatpush.bf16.msra.mxu0 0
      %544 = vmatpush.bf16.msra.mxu0 0
      %545 = vmatpush.bf16.msra.mxu0 0
      %546 = vmatpush.bf16.msra.mxu0 0
      %547 = vmatpush.bf16.msra.mxu0 %v538
      %548 = vmatmul.bf16.gmra.mxu0 %v535
      %v549 = vpop.f32.mrf.mxu0
      %v550 = vadd.f32 0.0, %v549
      %v551 = vpop.f32.mrf.mxu0
      %552 = vdwg.mxu0
      %v553 = vmul.f32 %v550, %v530
      %v554 = vpack.c.bf16 %v553, %v553
      %v555 = vld [vmem:[%s5 + $0x8] sm:$0xf]
      %v556 = vld [vmem:[%s5 + $0xc] sm:$0xf]
      %v559 = vunpack.c.l.b16 %v555
      %v560 = vunpack.c.l.b16 %v556
      %v561 = vpack.c.b16 %v560, %v559
      %v564 = vsel %vm415, %v554, 0
      %566 = vmatpush.bf16.msra.mxu0 0
      %567 = vmatpush.bf16.msra.mxu0 0
      %568 = vmatpush.bf16.msra.mxu0 0
      %569 = vmatpush.bf16.msra.mxu0 0
      %570 = vmatpush.bf16.msra.mxu0 0
      %571 = vmatpush.bf16.msra.mxu0 0
      %572 = vmatpush.bf16.msra.mxu0 0
      %573 = vmatpush.bf16.msra.mxu0 %v561
      %574 = vmatmul.bf16.gmra.mxu0 %v564
      %v575 = vpop.f32.mrf.mxu0
      %v576 = vadd.f32 0.0, %v575
      %v577 = vpop.f32.mrf.mxu0
      %578 = vdwg.mxu0
      %v579 = vadd.f32 %v496, %v576
      %580 = vrot.lane.b32.xlu0 %v412, 96
      %v581 = vpop.permute.xlu0 %580
      %582 = vrot.lane.b32.xlu0 %v412, 32
      %v583 = vpop.permute.xlu0 %582
      %v585 = vsel %vm415, %v581, 0
      %v588 = vsel %vm415, %v583, 0
      %590 = vmatpush.bf16.xpose.msra.mxu0 0
      %591 = vmatpush.bf16.xpose.msra.mxu0 0
      %592 = vmatpush.bf16.xpose.msra.mxu0 0
      %593 = vmatpush.bf16.xpose.msra.mxu0 0
      %594 = vmatpush.bf16.xpose.msra.mxu0 0
      %595 = vmatpush.bf16.xpose.msra.mxu0 0
      %596 = vmatpush.bf16.xpose.msra.mxu0 0
      %597 = vmatpush.bf16.xpose.msra.mxu0 %v588
      %598 = vmatmul.bf16.gmra.mxu0 %v585
      %v599 = vpop.f32.mrf.mxu0
      %v600 = vadd.f32 0.0, %v599
      %v601 = vpop.f32.mrf.mxu0
      %602 = vdwg.mxu0
      %v603 = vsel %vm404, %v600, -1e+30
      %v604 = vsel %vm436, %v603, -inf
      %605 = vmax.xlane.f32.xlu0 %v604
      %v606 = vpop.xlane.xlu0 %605
      %v607 = vsub.f32 %v603, %v606
      %v608 = vmul.f32 %v607, 1.442695
      %v609 = vpow.pop %v608
      %v610 = vsel %vm436, %v609, 0.0
      %611 = vadd.xlane.f32.xlu0 %v610
      %v612 = vpop.xlane.xlu0 %611
      %v613 = vrcp.pop %v612
      %v614 = vpack.c.bf16 %v609, %v609
      %615 = vrot.lane.b32.xlu0 %v449, 96
      %v616 = vpop.permute.xlu0 %615
      %v618 = vsel %vm436, %v614, 0
      %v621 = vsel %vm453, %v616, 0
      %623 = vmatpush.bf16.msra.mxu0 0
      %624 = vmatpush.bf16.msra.mxu0 0
      %625 = vmatpush.bf16.msra.mxu0 0
      %626 = vmatpush.bf16.msra.mxu0 0
      %627 = vmatpush.bf16.msra.mxu0 0
      %628 = vmatpush.bf16.msra.mxu0 0
      %629 = vmatpush.bf16.msra.mxu0 0
      %630 = vmatpush.bf16.msra.mxu0 %v621
      %631 = vmatmul.bf16.gmra.mxu0 %v618
      %v632 = vpop.f32.mrf.mxu0
      %v633 = vadd.f32 0.0, %v632
      %v634 = vpop.f32.mrf.mxu0
      %635 = vdwg.mxu0
      %v636 = vmul.f32 %v633, %v613
      %v637 = vpack.c.bf16 %v636, %v636
      %v638 = vld [vmem:[%s5 + $0x10] sm:$0xf]
      %v639 = vld [vmem:[%s5 + $0x14] sm:$0xf]
      %v642 = vunpack.c.l.b16 %v638
      %v643 = vunpack.c.l.b16 %v639
      %v644 = vpack.c.b16 %v643, %v642
      %v647 = vsel %vm415, %v637, 0
      %649 = vmatpush.bf16.msra.mxu0 0
      %650 = vmatpush.bf16.msra.mxu0 0
      %651 = vmatpush.bf16.msra.mxu0 0
      %652 = vmatpush.bf16.msra.mxu0 0
      %653 = vmatpush.bf16.msra.mxu0 0
      %654 = vmatpush.bf16.msra.mxu0 0
      %655 = vmatpush.bf16.msra.mxu0 0
      %656 = vmatpush.bf16.msra.mxu0 %v644
      %657 = vmatmul.bf16.gmra.mxu0 %v647
      %v658 = vpop.f32.mrf.mxu0
      %v659 = vadd.f32 0.0, %v658
      %v660 = vpop.f32.mrf.mxu0
      %661 = vdwg.mxu0
      %v662 = vadd.f32 %v579, %v659
      %663 = vrot.lane.b32.xlu0 %v412, 80
      %v664 = vpop.permute.xlu0 %663
      %665 = vrot.lane.b32.xlu0 %v412, 16
      %v666 = vpop.permute.xlu0 %665
      %v668 = vsel %vm415, %v664, 0
      %v671 = vsel %vm415, %v666, 0
      %673 = vmatpush.bf16.xpose.msra.mxu0 0
      %674 = vmatpush.bf16.xpose.msra.mxu0 0
      %675 = vmatpush.bf16.xpose.msra.mxu0 0
      %676 = vmatpush.bf16.xpose.msra.mxu0 0
      %677 = vmatpush.bf16.xpose.msra.mxu0 0
      %678 = vmatpush.bf16.xpose.msra.mxu0 0
      %679 = vmatpush.bf16.xpose.msra.mxu0 0
      %680 = vmatpush.bf16.xpose.msra.mxu0 %v671
      %681 = vmatmul.bf16.gmra.mxu0 %v668
      %v682 = vpop.f32.mrf.mxu0
      %v683 = vadd.f32 0.0, %v682
      %v684 = vpop.f32.mrf.mxu0
      %685 = vdwg.mxu0
      %v686 = vsel %vm404, %v683, -1e+30
      %v687 = vsel %vm436, %v686, -inf
      %688 = vmax.xlane.f32.xlu0 %v687
      %v689 = vpop.xlane.xlu0 %688
      %v690 = vsub.f32 %v686, %v689
      %v691 = vmul.f32 %v690, 1.442695
      %v692 = vpow.pop %v691
      %v693 = vsel %vm436, %v692, 0.0
      %694 = vadd.xlane.f32.xlu0 %v693
      %v695 = vpop.xlane.xlu0 %694
      %v696 = vrcp.pop %v695
      %v697 = vpack.c.bf16 %v692, %v692
      %698 = vrot.lane.b32.xlu0 %v449, 80
      %v699 = vpop.permute.xlu0 %698
      %v701 = vsel %vm436, %v697, 0
      %v704 = vsel %vm453, %v699, 0
      %706 = vmatpush.bf16.msra.mxu0 0
      %707 = vmatpush.bf16.msra.mxu0 0
      %708 = vmatpush.bf16.msra.mxu0 0
      %709 = vmatpush.bf16.msra.mxu0 0
      %710 = vmatpush.bf16.msra.mxu0 0
      %711 = vmatpush.bf16.msra.mxu0 0
      %712 = vmatpush.bf16.msra.mxu0 0
      %713 = vmatpush.bf16.msra.mxu0 %v704
      %714 = vmatmul.bf16.gmra.mxu0 %v701
      %v715 = vpop.f32.mrf.mxu0
      %v716 = vadd.f32 0.0, %v715
      %v717 = vpop.f32.mrf.mxu0
      %718 = vdwg.mxu0
      %v719 = vmul.f32 %v716, %v696
      %v720 = vpack.c.bf16 %v719, %v719
      %v721 = vld [vmem:[%s5 + $0x18] sm:$0xf]
      %v722 = vld [vmem:[%s5 + $0x1c] sm:$0xf]
      %v725 = vunpack.c.l.b16 %v721
      %v726 = vunpack.c.l.b16 %v722
      %v727 = vpack.c.b16 %v726, %v725
      %v730 = vsel %vm415, %v720, 0
      %732 = vmatpush.bf16.msra.mxu0 0
      %733 = vmatpush.bf16.msra.mxu0 0
      %734 = vmatpush.bf16.msra.mxu0 0
      %735 = vmatpush.bf16.msra.mxu0 0
      %736 = vmatpush.bf16.msra.mxu0 0
      %737 = vmatpush.bf16.msra.mxu0 0
      %738 = vmatpush.bf16.msra.mxu0 0
      %739 = vmatpush.bf16.msra.mxu0 %v727
      %740 = vmatmul.bf16.gmra.mxu0 %v730
      %v741 = vpop.f32.mrf.mxu0
      %v742 = vadd.f32 0.0, %v741
      %v743 = vpop.f32.mrf.mxu0
      %744 = vdwg.mxu0
      %v745 = vadd.f32 %v662, %v742
      %v746 = vpack.c.bf16 %v745, %v745
      %vm747 = vcmask 519168
      %748 = vst.msk [vmem:[%s273] sm:$0xf] %vm747, %v746
      %p749 = scmp.lt.s32.totalorder %s18, 3
      %s750 = scalar_select %p749, %s18, 3
      %s751 = smul.addr %s750, 4
      %s752 = scalar_lea.vmem %s7, %s751
      // Predicated region
      $region49: #{model_forward.7} parent=47 // pred_check
        %p753 = pneg %p188
      $region50: #{model_forward.7} parent=47 // pred_check_branch
        %755 = sbr.rel (%p753) target = $region52
      $region51: #{model_forward.7} parent=47 // pred_region
        _
      $region52: #{model_forward.7} parent=47 // pred_fallthru
        _
    $region48: #{model_forward.7} parent=5 // pred_fallthru
      _
    %p756 = scmp.le.s32.totalorder 2, %s13
    // Predicated region
    $region53: #{model_forward.7} parent=5 // pred_check
      %p757 = pneg %p756
    $region54: #{model_forward.7} parent=5 // pred_check_branch
      %759 = sbr.rel (%p757) target = $region56
    $region55: #{model_forward.7} parent=5 // pred_region
      %s760 = ssub.s32 %s13, 2
      // Predicated region
      $region57: #{model_forward.7} parent=55 // pred_check
        %p761 = pneg %p194
      $region58: #{model_forward.7} parent=55 // pred_check_branch
        %763 = sbr.rel (%p761) target = $region60
      $region59: #{model_forward.7} parent=55 // pred_region
        %p764 = scmp.lt.s32.totalorder %s19, 3
        %s765 = scalar_select %p764, %s19, 3
        %s766 = smul.addr %s765, 4
        %s767 = scalar_lea.vmem %s7, %s766
      $region60: #{model_forward.7} parent=55 // pred_fallthru
        _
    $region56: #{model_forward.7} parent=5 // pred_fallthru
      _
  $region6: #{model_forward.7} parent=0 // loop_footer
    %s17 = sadd.s32 1, %s13
  $region7: #{model_forward.7} parent=0 // loop_footer_branch
    %12 = sbr.rel target = $region3
  $region8: #{model_forward.7} parent=0 // loop_exit
    _

// kernel: model_forward.8
$region0: #{model_forward.8}
  #allocation0 [shape = 'u32[]', space=smem, size = 0x4, offset = 0x4, fixed_abs, tag = 'smem constant byte address 0x4 - core index']
  #allocation1 [shape = 'u32[72,128]{1,0:T(1,128)}', space=vmem, size = 0x9000, scoped, tag = 'internal scratch']
  %s0 = inlined_call_operand.vmem [shape: bf16[4,8,64], index: 0, kind: input, shape index: {}]
  %s1 = inlined_call_operand.vmem [shape: f32[1,64], index: 1, kind: input, shape index: {}]
  %s2 = inlined_call_operand.vmem [shape: f32[1,64], index: 2, kind: input, shape index: {}]
  %s3 = inlined_call_operand.vmem [shape: bf16[64,256], index: 3, kind: input, shape index: {}]
  %s4 = inlined_call_operand.vmem [shape: f32[1,256], index: 4, kind: input, shape index: {}]
  %s5 = inlined_call_operand.vmem [shape: bf16[256,64], index: 5, kind: input, shape index: {}]
  %s6 = inlined_call_operand.vmem [shape: f32[1,64], index: 6, kind: input, shape index: {}]
  %s7 = inlined_call_operand.vmem [shape: bf16[4,8,64], index: 7, kind: output, shape index: {}]
  %s8 = sld [smem:[#allocation0]]
  $region61: #{model_forward.8} parent=0
    _
  %s10 = ssub.s32 1, %s8
  %s11 = scalar_select 0, %s10, %s8
  loop: start=0, step=1, limit=6
  $region2: #{model_forward.8} parent=0 // loop_pre_header
    _
  $region3: #{model_forward.8} parent=0 // loop_header
    %s13 = sphi 0, %s17
    %p14 = scmp.ge.s32.totalorder %s13, 6
    %s23 = sphi 0, %s25
    %s26 = sphi 0, %s23
    %s27 = sphi 0, %s26
    %s43 = sphi 0, %s27
    %s47 = sphi 0, %s47
    %s49 = sphi 0, %s47
    %s50 = sphi 0, %s49
    %s64 = sphi 0, %s50
    %s68 = sphi 0, %s68
    %s70 = sphi 0, %s68
    %s71 = sphi 0, %s70
    %s85 = sphi 0, %s71
    %s89 = sphi 0, %s89
    %s91 = sphi 0, %s89
    %s92 = sphi 0, %s91
    %s106 = sphi 0, %s92
    %s110 = sphi 0, %s110
    %s112 = sphi 0, %s110
    %s113 = sphi 0, %s112
    %s127 = sphi 0, %s113
    %s131 = sphi 0, %s131
    %s133 = sphi 0, %s131
    %s134 = sphi 0, %s133
    %s148 = sphi 0, %s134
    %s152 = sphi 0, %s152
    %s154 = sphi 0, %s152
    %s155 = sphi 0, %s154
    %s169 = sphi 0, %s155
    %s175 = sphi 0, %s177
    %s178 = sphi 0, %s175
    %s179 = sphi 0, %s178
    %s195 = sphi 0, %s179
  $region4: #{model_forward.8} parent=0 // loop_header_branch
    %16 = sbr.rel (%p14) target = $region8
  $region5: #{model_forward.8} parent=0 // loop_body
    %s18 = ssub.s32 %s13, 1
    %s19 = ssub.s32 %s13, 2
    %s20 = sadd.s32 %s13, 1
    %s21 = ssub.s32 %s13, %s20
    %p22 = scmp.eq.s32.totalorder %s21, 0
    %s24 = sadd.s32 %s23, 1
    %s25 = scalar_select %p22, %s23, %s24
    %p28 = pneg %p22
    %p29 = scmp.eq.s32.totalorder %s13, 3
    %p30 = por %p28, %p29
    %p31 = scmp.ne.s32.totalorder %s23, %s26
    %p32 = scmp.eq.s32.totalorder %s13, 0
    %p33 = por %p31, %p32
    %p34 = scmp.ne.s32.totalorder %s23, %s26
    %p35 = scmp.eq.s32.totalorder %s18, 3
    %p36 = por %p34, %p35
    %p37 = scmp.ne.s32.totalorder %s26, %s27
    %p38 = scmp.eq.s32.totalorder %s18, 0
    %p39 = por %p37, %p38
    %p40 = scmp.ne.s32.totalorder %s26, %s27
    %p41 = scmp.eq.s32.totalorder %s19, 3
    %p42 = por %p40, %p41
    %p44 = scmp.ne.s32.totalorder %s27, %s43
    %p45 = scmp.eq.s32.totalorder %s19, 0
    %p46 = por %p44, %p45
    %s48 = sadd.s32 %s47, 1
    %p51 = scmp.eq.s32.totalorder %s13, 3
    %p52 = scmp.ne.s32.totalorder %s47, %s49
    %p53 = scmp.eq.s32.totalorder %s13, 0
    %p54 = por %p52, %p53
    %p55 = scmp.ne.s32.totalorder %s47, %s49
    %p56 = scmp.eq.s32.totalorder %s18, 3
    %p57 = por %p55, %p56
    %p58 = scmp.ne.s32.totalorder %s49, %s50
    %p59 = scmp.eq.s32.totalorder %s18, 0
    %p60 = por %p58, %p59
    %p61 = scmp.ne.s32.totalorder %s49, %s50
    %p62 = scmp.eq.s32.totalorder %s19, 3
    %p63 = por %p61, %p62
    %p65 = scmp.ne.s32.totalorder %s50, %s64
    %p66 = scmp.eq.s32.totalorder %s19, 0
    %p67 = por %p65, %p66
    %s69 = sadd.s32 %s68, 1
    %p72 = scmp.eq.s32.totalorder %s13, 3
    %p73 = scmp.ne.s32.totalorder %s68, %s70
    %p74 = scmp.eq.s32.totalorder %s13, 0
    %p75 = por %p73, %p74
    %p76 = scmp.ne.s32.totalorder %s68, %s70
    %p77 = scmp.eq.s32.totalorder %s18, 3
    %p78 = por %p76, %p77
    %p79 = scmp.ne.s32.totalorder %s70, %s71
    %p80 = scmp.eq.s32.totalorder %s18, 0
    %p81 = por %p79, %p80
    %p82 = scmp.ne.s32.totalorder %s70, %s71
    %p83 = scmp.eq.s32.totalorder %s19, 3
    %p84 = por %p82, %p83
    %p86 = scmp.ne.s32.totalorder %s71, %s85
    %p87 = scmp.eq.s32.totalorder %s19, 0
    %p88 = por %p86, %p87
    %s90 = sadd.s32 %s89, 1
    %p93 = scmp.eq.s32.totalorder %s13, 3
    %p94 = scmp.ne.s32.totalorder %s89, %s91
    %p95 = scmp.eq.s32.totalorder %s13, 0
    %p96 = por %p94, %p95
    %p97 = scmp.ne.s32.totalorder %s89, %s91
    %p98 = scmp.eq.s32.totalorder %s18, 3
    %p99 = por %p97, %p98
    %p100 = scmp.ne.s32.totalorder %s91, %s92
    %p101 = scmp.eq.s32.totalorder %s18, 0
    %p102 = por %p100, %p101
    %p103 = scmp.ne.s32.totalorder %s91, %s92
    %p104 = scmp.eq.s32.totalorder %s19, 3
    %p105 = por %p103, %p104
    %p107 = scmp.ne.s32.totalorder %s92, %s106
    %p108 = scmp.eq.s32.totalorder %s19, 0
    %p109 = por %p107, %p108
    %s111 = sadd.s32 %s110, 1
    %p114 = scmp.eq.s32.totalorder %s13, 3
    %p115 = scmp.ne.s32.totalorder %s110, %s112
    %p116 = scmp.eq.s32.totalorder %s13, 0
    %p117 = por %p115, %p116
    %p118 = scmp.ne.s32.totalorder %s110, %s112
    %p119 = scmp.eq.s32.totalorder %s18, 3
    %p120 = por %p118, %p119
    %p121 = scmp.ne.s32.totalorder %s112, %s113
    %p122 = scmp.eq.s32.totalorder %s18, 0
    %p123 = por %p121, %p122
    %p124 = scmp.ne.s32.totalorder %s112, %s113
    %p125 = scmp.eq.s32.totalorder %s19, 3
    %p126 = por %p124, %p125
    %p128 = scmp.ne.s32.totalorder %s113, %s127
    %p129 = scmp.eq.s32.totalorder %s19, 0
    %p130 = por %p128, %p129
    %s132 = sadd.s32 %s131, 1
    %p135 = scmp.eq.s32.totalorder %s13, 3
    %p136 = scmp.ne.s32.totalorder %s131, %s133
    %p137 = scmp.eq.s32.totalorder %s13, 0
    %p138 = por %p136, %p137
    %p139 = scmp.ne.s32.totalorder %s131, %s133
    %p140 = scmp.eq.s32.totalorder %s18, 3
    %p141 = por %p139, %p140
    %p142 = scmp.ne.s32.totalorder %s133, %s134
    %p143 = scmp.eq.s32.totalorder %s18, 0
    %p144 = por %p142, %p143
    %p145 = scmp.ne.s32.totalorder %s133, %s134
    %p146 = scmp.eq.s32.totalorder %s19, 3
    %p147 = por %p145, %p146
    %p149 = scmp.ne.s32.totalorder %s134, %s148
    %p150 = scmp.eq.s32.totalorder %s19, 0
    %p151 = por %p149, %p150
    %s153 = sadd.s32 %s152, 1
    %p156 = scmp.eq.s32.totalorder %s13, 3
    %p157 = scmp.ne.s32.totalorder %s152, %s154
    %p158 = scmp.eq.s32.totalorder %s13, 0
    %p159 = por %p157, %p158
    %p160 = scmp.ne.s32.totalorder %s152, %s154
    %p161 = scmp.eq.s32.totalorder %s18, 3
    %p162 = por %p160, %p161
    %p163 = scmp.ne.s32.totalorder %s154, %s155
    %p164 = scmp.eq.s32.totalorder %s18, 0
    %p165 = por %p163, %p164
    %p166 = scmp.ne.s32.totalorder %s154, %s155
    %p167 = scmp.eq.s32.totalorder %s19, 3
    %p168 = por %p166, %p167
    %p170 = scmp.ne.s32.totalorder %s155, %s169
    %p171 = scmp.eq.s32.totalorder %s19, 0
    %p172 = por %p170, %p171
    %s173 = ssub.s32 %s13, %s20
    %p174 = scmp.eq.s32.totalorder %s173, 0
    %s176 = sadd.s32 %s175, 1
    %s177 = scalar_select %p174, %s175, %s176
    %p180 = pneg %p174
    %p181 = scmp.eq.s32.totalorder %s13, 3
    %p182 = por %p180, %p181
    %p183 = scmp.ne.s32.totalorder %s175, %s178
    %p184 = scmp.eq.s32.totalorder %s13, 0
    %p185 = por %p183, %p184
    %p186 = scmp.ne.s32.totalorder %s175, %s178
    %p187 = scmp.eq.s32.totalorder %s18, 3
    %p188 = por %p186, %p187
    %p189 = scmp.ne.s32.totalorder %s178, %s179
    %p190 = scmp.eq.s32.totalorder %s18, 0
    %p191 = por %p189, %p190
    %p192 = scmp.ne.s32.totalorder %s178, %s179
    %p193 = scmp.eq.s32.totalorder %s19, 3
    %p194 = por %p192, %p193
    %p196 = scmp.ne.s32.totalorder %s179, %s195
    %p197 = scmp.eq.s32.totalorder %s19, 0
    %p198 = por %p196, %p197
    %p199 = scmp.le.s32.totalorder 1, %s13
    %p200 = scmp.lt.s32.totalorder %s13, 5
    %p201 = pnand %p199, %p200
    %p202 = pneg %p201
    // Predicated region
    $region9: #{model_forward.8} parent=5 // pred_check
      _
    $region10: #{model_forward.8} parent=5 // pred_check_branch
      %204 = sbr.rel (%p201) target = $region12
    $region11: #{model_forward.8} parent=5 // pred_region
      %s205 = ssub.s32 %s13, 1
      // Predicated region
      $region13: #{model_forward.8} parent=11 // pred_check
        %p206 = pneg %p60
      $region14: #{model_forward.8} parent=11 // pred_check_branch
        %208 = sbr.rel (%p206) target = $region16
      $region15: #{model_forward.8} parent=11 // pred_region
        _
      $region16: #{model_forward.8} parent=11 // pred_fallthru
        _
      // Predicated region
      $region17: #{model_forward.8} parent=11 // pred_check
        %p209 = pneg %p81
      $region18: #{model_forward.8} parent=11 // pred_check_branch
        %211 = sbr.rel (%p209) target = $region20
      $region19: #{model_forward.8} parent=11 // pred_region
        _
      $region20: #{model_forward.8} parent=11 // pred_fallthru
        _
      // Predicated region
      $region21: #{model_forward.8} parent=11 // pred_check
        %p212 = pneg %p102
      $region22: #{model_forward.8} parent=11 // pred_check_branch
        %214 = sbr.rel (%p212) target = $region24
      $region23: #{model_forward.8} parent=11 // pred_region
        _
      $region24: #{model_forward.8} parent=11 // pred_fallthru
        _
      // Predicated region
      $region25: #{model_forward.8} parent=11 // pred_check
        %p215 = pneg %p123
      $region26: #{model_forward.8} parent=11 // pred_check_branch
        %217 = sbr.rel (%p215) target = $region28
      $region27: #{model_forward.8} parent=11 // pred_region
        _
      $region28: #{model_forward.8} parent=11 // pred_fallthru
        _
      // Predicated region
      $region29: #{model_forward.8} parent=11 // pred_check
        %p218 = pneg %p144
      $region30: #{model_forward.8} parent=11 // pred_check_branch
        %220 = sbr.rel (%p218) target = $region32
      $region31: #{model_forward.8} parent=11 // pred_region
        _
      $region32: #{model_forward.8} parent=11 // pred_fallthru
        _
      // Predicated region
      $region33: #{model_forward.8} parent=11 // pred_check
        %p221 = pneg %p165
      $region34: #{model_forward.8} parent=11 // pred_check_branch
        %223 = sbr.rel (%p221) target = $region36
      $region35: #{model_forward.8} parent=11 // pred_region
        _
      $region36: #{model_forward.8} parent=11 // pred_fallthru
        _
    $region12: #{model_forward.8} parent=5 // pred_fallthru
      _
    %p224 = scmp.lt.s32.totalorder %s13, 4
    // Predicated region
    $region37: #{model_forward.8} parent=5 // pred_check
      %p225 = pneg %p224
    $region38: #{model_forward.8} parent=5 // pred_check_branch
      %227 = sbr.rel (%p225) target = $region40
    $region39: #{model_forward.8} parent=5 // pred_region
      // Predicated region
      $region41: #{model_forward.8} parent=39 // pred_check
        %p228 = pneg %p33
      $region42: #{model_forward.8} parent=39 // pred_check_branch
        %230 = sbr.rel (%p228) target = $region44
      $region43: #{model_forward.8} parent=39 // pred_region
        %p231 = scmp.lt.s32.totalorder %s13, 3
        %s232 = scalar_select %p231, %s13, 3
        %s233 = smul.addr %s232, 4
        %s234 = scalar_lea.vmem %s0, %s233
      $region44: #{model_forward.8} parent=39 // pred_fallthru
        _
    $region40: #{model_forward.8} parent=5 // pred_fallthru
      _
    %p235 = scmp.le.s32.totalorder 1, %s13
    %p236 = scmp.lt.s32.totalorder %s13, 5
    %p237 = pnand %p235, %p236
    %p238 = pneg %p237
    // Predicated region
    $region45: #{model_forward.8} parent=5 // pred_check
      _
    $region46: #{model_forward.8} parent=5 // pred_check_branch
      %240 = sbr.rel (%p237) target = $region48
    $region47: #{model_forward.8} parent=5 // pred_region
      %s241 = ssub.s32 %s13, 1
      %p242 = scmp.lt.s32.totalorder %s18, 3
      %s243 = scalar_select %p242, %s18, 3
      %s244 = smul.addr %s243, 4
      %s245 = scalar_lea.vmem %s0, %s244
      %p246 = pneg %p39
      %p247 = pneg %p36
      %p248 = pneg %p60
      %p249 = pneg %p57
      %p250 = pneg %p81
      %p251 = pneg %p78
      %p252 = pneg %p102
      %p253 = pneg %p99
      %p254 = pneg %p123
      %p255 = pneg %p120
      %p256 = pneg %p144
      %p257 = pneg %p141
      %p258 = pneg %p165
      %p259 = pneg %p162
      %p260 = pneg %p191
      %p261 = pneg %p188
      %p262 = scmp.lt.s32.totalorder %s18, 3
      %s263 = scalar_select %p262, %s18, 3
      %s264 = smul.addr %s263, 4
      %s265 = scalar_lea.vmem %s7, %s264
      %p266 = scmp.lt.s32.totalorder %s18, 3
      %s267 = scalar_select %p266, %s18, 3
      %s268 = smul.addr %s267, 4
      %s269 = scalar_lea.vmem %s0, %s268
      %p270 = scmp.lt.s32.totalorder %s18, 3
      %s271 = scalar_select %p270, %s18, 3
      %s272 = smul.addr %s271, 4
      %s273 = scalar_lea.vmem %s7, %s272
      %v275 = vld [vmem:[%s269] sm:$0xf]
      %v276 = vunpack.c.l.bf16 %v275
      %vm277 = vcmask 523264
      %v278 = vsel %vm277, %v276, 0.0
      %279 = vadd.xlane.f32.xlu0 %v278
      %v280 = vpop.xlane.xlu0 %279
      %v281 = vrcp.pop 64.0
      %v282 = vmul.f32 64.0, %v281
      %v283 = vsub.f32 1.0, %v282
      %v284 = vmul.f32 %v281, %v283
      %v285 = vadd.f32 %v281, %v284
      %vm286 = vweird.f32 %v281
      %v287 = vsel %vm286, %v281, %v285
      %v288 = vmul.f32 %v280, %v287
      %v289 = vsub.f32 %v276, %v288
      %v290 = vmul.f32 %v289, %v289
      %v291 = vsel %vm277, %v290, 0.0
      %292 = vadd.xlane.f32.xlu0 %v291
      %v293 = vpop.xlane.xlu0 %292
      %v294 = vmul.f32 %v293, %v287
      %v295 = vadd.f32 %v294, 1e-06
      %v296 = vrsqrt.pop %v295
      %v297 = vmul.f32 %v296, %v295
      %v298 = vmul.f32 %v297, %v296
      %v299 = vmul.f32 0.5, %v298
      %v300 = vsub.f32 1.5, %v299
      %v301 = vmul.f32 %v296, %v300
      %vm302 = vweird.f32 %v295
      %vm303 = vweird.f32 %v296
      %vm304 = vmor %vm302, %vm303
      %v305 = vsel %vm304, %v296, %v301
      %v306 = vmul.f32 %v289, %v305
      %v307 = vld [vmem:[%s1] sm:$0x1]
      %v309 = vperm.slane %v307, 0
      %v311 = vmul.f32 %v306, %v309
      %v312 = vld [vmem:[%s2] sm:$0x1]
      %v314 = vperm.slane %v312, 0
      %v316 = vadd.f32 %v311, %v314
      %v317 = vpack.c.bf16 %v316, %v316
      %v318 = vld [vmem:[%s3] sm:$0xff]
      %v319 = vld [vmem:[%s3 + $0x8] sm:$0xff]
      %v320 = vld [vmem:[%s3 + $0x10] sm:$0xff]
      %v321 = vld [vmem:[%s3 + $0x18] sm:$0xff]
      %v322 = vld [vmem:[%s3 + $0x20] sm:$0xff]
      %v323 = vld [vmem:[%s3 + $0x28] sm:$0xff]
      %v324 = vld [vmem:[%s3 + $0x30] sm:$0xff]
      %v325 = vld [vmem:[%s3 + $0x38] sm:$0xff]
      %v326 = vld [vmem:[%s4] sm:$0x3]
      %v328 = vperm.slane %v326, 0
      %v329 = vperm.slane %v326, 1
      %v340 = vunpack.c.l.b16 %v318
      %v341 = vunpack.c.h.b16 %v318
      %v342 = vunpack.c.l.b16 %v319
      %v343 = vunpack.c.h.b16 %v319
      %v344 = vunpack.c.l.b16 %v320
      %v345 = vunpack.c.h.b16 %v320
      %v346 = vunpack.c.l.b16 %v321
      %v347 = vunpack.c.h.b16 %v321
      %v348 = vunpack.c.l.b16 %v322
      %v349 = vunpack.c.h.b16 %v322
      %v350 = vunpack.c.l.b16 %v323
      %v351 = vunpack.c.h.b16 %v323
      %v352 = vunpack.c.l.b16 %v324
      %v353 = vunpack.c.h.b16 %v324
      %v354 = vunpack.c.l.b16 %v325
      %v355 = vunpack.c.h.b16 %v325
      %v356 = vpack.c.b16 %v342, %v340
      %v357 = vpack.c.b16 %v343, %v341
      %v358 = vpack.c.b16 %v346, %v344
      %v359 = vpack.c.b16 %v347, %v345
      %v360 = vpack.c.b16 %v350, %v348
      %v361 = vpack.c.b16 %v351, %v349
      %v362 = vpack.c.b16 %v354, %v352
      %v363 = vpack.c.b16 %v355, %v353
      %v373 = vsel %vm277, %v317, 0
      %375 = vmatpush.bf16.msra.mxu0 0
      %376 = vmatpush.bf16.msra.mxu0 0
      %377 = vmatpush.bf16.msra.mxu0 0
      %378 = vmatpush.bf16.msra.mxu0 0
      %379 = vmatpush.bf16.msra.mxu0 %v362
      %380 = vmatpush.bf16.msra.mxu0 %v360
      %381 = vmatpush.bf16.msra.mxu0 %v358
      %382 = vmatpush.bf16.msra.mxu0 %v356
      %383 = vmatmul.bf16.gmra.mxu0 %v373
      %v384 = vpop.f32.mrf.mxu0
      %v385 = vadd.f32 %v328, %v384
      %v386 = vpop.f32.mrf.mxu0
      %387 = vdwg.mxu0
      %388 = vmatpush.bf16.msra.mxu0 0
      %389 = vmatpush.bf16.msra.mxu0 0
      %390 = vmatpush.bf16.msra.mxu0 0
      %391 = vmatpush.bf16.msra.mxu0 0
      %392 = vmatpush.bf16.msra.mxu0 %v363
      %393 = vmatpush.bf16.msra.mxu0 %v361
      %394 = vmatpush.bf16.msra.mxu0 %v359
      %395 = vmatpush.bf16.msra.mxu0 %v357
      %396 = vmatmul.bf16.gmra.mxu0 %v373
      %v397 = vpop.f32.mrf.mxu0
      %v398 = vadd.f32 %v329, %v397
      %v399 = vpop.f32.mrf.mxu0
      %400 = vdwg.mxu0
      %v401 = vmul.f32 %v385, 0.5
      %v402 = vmul.f32 %v398, 0.5
      %v403 = vmul.f32 %v385, 0.044715
      %v404 = vmul.f32 %v398, 0.044715
      %v405 = vmul.f32 %v403, %v385
      %v406 = vmul.f32 %v404, %v398
      %v407 = vmul.f32 %v405, %v385
      %v408 = vmul.f32 %v406, %v398
      %v409 = vadd.f32 %v385, %v407
      %v410 = vadd.f32 %v398, %v408
      %v411 = vmul.f32 %v409, 0.7978846
      %v412 = vmul.f32 %v410, 0.7978846
      %v413 = vtanh.pop %v411
      %v414 = vtanh.pop %v412
      %v415 = vadd.f32 %v413, 1.0
      %v416 = vadd.f32 %v414, 1.0
      %v417 = vmul.f32 %v401, %v415
      %v418 = vmul.f32 %v402, %v416
      %v419 = vpack.c.bf16 %v417, %v417
      %v420 = vpack.c.bf16 %v418, %v418
      %v421 = vld [vmem:[%s5] sm:$0xf]
      %v422 = vld [vmem:[%s5 + $0x4] sm:$0xf]
      %v423 = vld [vmem:[%s5 + $0x8] sm:$0xf]
      %v424 = vld [vmem:[%s5 + $0xc] sm:$0xf]
      %v425 = vld [vmem:[%s5 + $0x10] sm:$0xf]
      %v426 = vld [vmem:[%s5 + $0x14] sm:$0xf]
      %v427 = vld [vmem:[%s5 + $0x18] sm:$0xf]
      %v428 = vld [vmem:[%s5 + $0x1c] sm:$0xf]
      %v429 = vld [vmem:[%s5 + $0x20] sm:$0xf]
      %v430 = vld [vmem:[%s5 + $0x24] sm:$0xf]
      %v431 = vld [vmem:[%s5 + $0x28] sm:$0xf]
      %v432 = vld [vmem:[%s5 + $0x2c] sm:$0xf]
      %v433 = vld [vmem:[%s5 + $0x30] sm:$0xf]
      %v434 = vld [vmem:[%s5 + $0x34] sm:$0xf]
      %v435 = vld [vmem:[%s5 + $0x38] sm:$0xf]
      %v436 = vld [vmem:[%s5 + $0x3c] sm:$0xf]
      %v437 = vld [vmem:[%s5 + $0x40] sm:$0xf]
      %v438 = vld [vmem:[%s5 + $0x44] sm:$0xf]
      %v439 = vld [vmem:[%s5 + $0x48] sm:$0xf]
      %v440 = vld [vmem:[%s5 + $0x4c] sm:$0xf]
      %v441 = vld [vmem:[%s5 + $0x50] sm:$0xf]
      %v442 = vld [vmem:[%s5 + $0x54] sm:$0xf]
      %v443 = vld [vmem:[%s5 + $0x58] sm:$0xf]
      %v444 = vld [vmem:[%s5 + $0x5c] sm:$0xf]
      %v445 = vld [vmem:[%s5 + $0x60] sm:$0xf]
      %v446 = vld [vmem:[%s5 + $0x64] sm:$0xf]
      %v447 = vld [vmem:[%s5 + $0x68] sm:$0xf]
      %v448 = vld [vmem:[%s5 + $0x6c] sm:$0xf]
      %v449 = vld [vmem:[%s5 + $0x70] sm:$0xf]
      %v450 = vld [vmem:[%s5 + $0x74] sm:$0xf]
      %v451 = vld [vmem:[%s5 + $0x78] sm:$0xf]
      %v452 = vld [vmem:[%s5 + $0x7c] sm:$0xf]
      %v453 = vld [vmem:[%s6] sm:$0x1]
      %v455 = vperm.slane %v453, 0
      %v489 = vunpack.c.l.b16 %v421
      %v490 = vunpack.c.l.b16 %v422
      %v491 = vunpack.c.l.b16 %v423
      %v492 = vunpack.c.l.b16 %v424
      %v493 = vunpack.c.l.b16 %v425
      %v494 = vunpack.c.l.b16 %v426
      %v495 = vunpack.c.l.b16 %v427
      %v496 = vunpack.c.l.b16 %v428
      %v497 = vunpack.c.l.b16 %v429
      %v498 = vunpack.c.l.b16 %v430
      %v499 = vunpack.c.l.b16 %v431
      %v500 = vunpack.c.l.b16 %v432
      %v501 = vunpack.c.l.b16 %v433
      %v502 = vunpack.c.l.b16 %v434
      %v503 = vunpack.c.l.b16 %v435
      %v504 = vunpack.c.l.b16 %v436
      %v505 = vunpack.c.l.b16 %v437
      %v506 = vunpack.c.l.b16 %v438
      %v507 = vunpack.c.l.b16 %v439
      %v508 = vunpack.c.l.b16 %v440
      %v509 = vunpack.c.l.b16 %v441
      %v510 = vunpack.c.l.b16 %v442
      %v511 = vunpack.c.l.b16 %v443
      %v512 = vunpack.c.l.b16 %v444
      %v513 = vunpack.c.l.b16 %v445
      %v514 = vunpack.c.l.b16 %v446
      %v515 = vunpack.c.l.b16 %v447
      %v516 = vunpack.c.l.b16 %v448
      %v517 = vunpack.c.l.b16 %v449
      %v518 = vunpack.c.l.b16 %v450
      %v519 = vunpack.c.l.b16 %v451
      %v520 = vunpack.c.l.b16 %v452
      %v521 = vpack.c.b16 %v490, %v489
      %v522 = vpack.c.b16 %v492, %v491
      %v523 = vpack.c.b16 %v494, %v493
      %v524 = vpack.c.b16 %v496, %v495
      %v525 = vpack.c.b16 %v498, %v497
      %v526 = vpack.c.b16 %v500, %v499
      %v527 = vpack.c.b16 %v502, %v501
      %v528 = vpack.c.b16 %v504, %v503
      %v529 = vpack.c.b16 %v506, %v505
      %v530 = vpack.c.b16 %v508, %v507
      %v531 = vpack.c.b16 %v510, %v509
      %v532 = vpack.c.b16 %v512, %v511
      %v533 = vpack.c.b16 %v514, %v513
      %v534 = vpack.c.b16 %v516, %v515
      %v535 = vpack.c.b16 %v518, %v517
      %v536 = vpack.c.b16 %v520, %v519
      %553 = vmatpush.bf16.msra.mxu0 %v528
      %554 = vmatpush.bf16.msra.mxu0 %v527
      %555 = vmatpush.bf16.msra.mxu0 %v526
      %556 = vmatpush.bf16.msra.mxu0 %v525
      %557 = vmatpush.bf16.msra.mxu0 %v524
      %558 = vmatpush.bf16.msra.mxu0 %v523
      %559 = vmatpush.bf16.msra.mxu0 %v522
      %560 = vmatpush.bf16.msra.mxu0 %v521
      %561 = vmatmul.bf16.gmra.mxu0 %v419
      %v562 = vpop.f32.mrf.mxu0
      %v563 = vadd.f32 %v455, %v562
      %v564 = vpop.f32.mrf.mxu0
      %565 = vdwg.mxu0
      %566 = vmatpush.bf16.msra.mxu0 %v536
      %567 = vmatpush.bf16.msra.mxu0 %v535
      %568 = vmatpush.bf16.msra.mxu0 %v534
      %569 = vmatpush.bf16.msra.mxu0 %v533
      %570 = vmatpush.bf16.msra.mxu0 %v532
      %571 = vmatpush.bf16.msra.mxu0 %v531
      %572 = vmatpush.bf16.msra.mxu0 %v530
      %573 = vmatpush.bf16.msra.mxu0 %v529
      %574 = vmatmul.bf16.gmra.mxu0 %v420
      %v575 = vpop.f32.mrf.mxu0
      %v576 = vadd.f32 %v563, %v575
      %v577 = vpop.f32.mrf.mxu0
      %578 = vdwg.mxu0
      %v579 = vadd.f32 %v576, %v276
      %v580 = vpack.c.bf16 %v579, %v579
      %vm581 = vcmask 519168
      %582 = vst.msk [vmem:[%s273] sm:$0xf] %vm581, %v580
      %p583 = scmp.lt.s32.totalorder %s18, 3
      %s584 = scalar_select %p583, %s18, 3
      %s585 = smul.addr %s584, 4
      %s586 = scalar_lea.vmem %s7, %s585
      // Predicated region
      $region49: #{model_forward.8} parent=47 // pred_check
        %p587 = pneg %p188
      $region50: #{model_forward.8} parent=47 // pred_check_branch
        %589 = sbr.rel (%p587) target = $region52
      $region51: #{model_forward.8} parent=47 // pred_region
        _
      $region52: #{model_forward.8} parent=47 // pred_fallthru
        _
    $region48: #{model_forward.8} parent=5 // pred_fallthru
      _
    %p590 = scmp.le.s32.totalorder 2, %s13
    // Predicated region
    $region53: #{model_forward.8} parent=5 // pred_check
      %p591 = pneg %p590
    $region54: #{model_forward.8} parent=5 // pred_check_branch
      %593 = sbr.rel (%p591) target = $region56
    $region55: #{model_forward.8} parent=5 // pred_region
      %s594 = ssub.s32 %s13, 2
      // Predicated region
      $region57: #{model_forward.8} parent=55 // pred_check
        %p595 = pneg %p194
      $region58: #{model_forward.8} parent=55 // pred_check_branch
        %597 = sbr.rel (%p595) target = $region60
      $region59: #{model_forward.8} parent=55 // pred_region
        %p598 = scmp.lt.s32.totalorder %s19, 3
        %s599 = scalar_select %p598, %s19, 3
        %s600 = smul.addr %s599, 4
        %s601 = scalar_lea.vmem %s7, %s600
      $region60: #{model_forward.8} parent=55 // pred_fallthru
        _
    $region56: #{model_forward.8} parent=5 // pred_fallthru
      _
  $region6: #{model_forward.8} parent=0 // loop_footer
    %s17 = sadd.s32 1, %s13
  $region7: #{model_forward.8} parent=0 // loop_footer_branch
    %12 = sbr.rel target = $region3
  $region8: #{model_forward.8} parent=0 // loop_exit
    _

// kernel: model_forward.11
$region0: #{model_forward.11}
  #allocation0 [shape = 'u32[]', space=smem, size = 0x4, offset = 0x4, fixed_abs, tag = 'smem constant byte address 0x4 - core index']
  #allocation1 [shape = 'u32[72,128]{1,0:T(1,128)}', space=vmem, size = 0x9000, scoped, tag = 'internal scratch']
  %s0 = inlined_call_operand.vmem [shape: bf16[2,2,64], index: 0, kind: input, shape index: {}, may-alias: {0,1}]
  %s1 = inlined_call_operand.vmem [shape: bf16[2,2,64], index: 1, kind: input, shape index: {}, may-alias: {0,1}]
  %s2 = inlined_call_operand.vmem [shape: f32[1,64], index: 2, kind: input, shape index: {}]
  %s3 = inlined_call_operand.vmem [shape: f32[1,64], index: 3, kind: input, shape index: {}]
  %s4 = inlined_call_operand.vmem [shape: bf16[64,128], index: 4, kind: input, shape index: {}]
  %s5 = inlined_call_operand.vmem [shape: f32[1,128], index: 5, kind: input, shape index: {}]
  %s6 = inlined_call_operand.vmem [shape: bf16[128,128], index: 6, kind: input, shape index: {}]
  %s7 = inlined_call_operand.vmem [shape: f32[1,128], index: 7, kind: input, shape index: {}]
  %s8 = inlined_call_operand.hbm [shape: f32[2,128], index: 8, kind: output, shape index: {}]
  %s9 = sld [smem:[#allocation0]]
  $region42: #{model_forward.11} parent=0
    _
  %s11 = ssub.s32 1, %s9
  %s12 = scalar_select 0, %s11, %s9
  $region1: #{model_forward.11} parent=0
    #allocation2 [shape = 'u8[1024]{0}', space=vmem, size = 0x400, scoped, tag = 'output window, operand 0, single buffered']
    #allocation3 [shape = 's32[1]{0}', space=sflag, size = 0x4, scoped, tag = 'scoped memory for model_forward.11']
    %13 = vsyncpa [#allocation3], 0
    // Predicated region
    $region2: #{model_forward.11} parent=1 // pred_check
      _
    $region3: #{model_forward.11} parent=1 // pred_check_branch
      %15 = sbr.rel (0) target = $region5
    $region4: #{model_forward.11} parent=1 // pred_region
      _
    $region5: #{model_forward.11} parent=1 // pred_fallthru
      _
    // Predicated region
    $region6: #{model_forward.11} parent=1 // pred_check
      _
    $region7: #{model_forward.11} parent=1 // pred_check_branch
      %17 = sbr.rel (0) target = $region9
    $region8: #{model_forward.11} parent=1 // pred_region
      %s18 = scalar_lea.vmem %s1, 1
    $region9: #{model_forward.11} parent=1 // pred_fallthru
      _
    // Predicated region
    $region10: #{model_forward.11} parent=1 // pred_check
      _
    $region11: #{model_forward.11} parent=1 // pred_check_branch
      %20 = sbr.rel (0) target = $region13
    $region12: #{model_forward.11} parent=1 // pred_region
      _
    $region13: #{model_forward.11} parent=1 // pred_fallthru
      _
    // Predicated region
    $region14: #{model_forward.11} parent=1 // pred_check
      _
    $region15: #{model_forward.11} parent=1 // pred_check_branch
      %22 = sbr.rel (0) target = $region17
    $region16: #{model_forward.11} parent=1 // pred_region
      _
    $region17: #{model_forward.11} parent=1 // pred_fallthru
      _
    // Predicated region
    $region18: #{model_forward.11} parent=1 // pred_check
      _
    $region19: #{model_forward.11} parent=1 // pred_check_branch
      %24 = sbr.rel (0) target = $region21
    $region20: #{model_forward.11} parent=1 // pred_region
      _
    $region21: #{model_forward.11} parent=1 // pred_fallthru
      _
    // Predicated region
    $region22: #{model_forward.11} parent=1 // pred_check
      _
    $region23: #{model_forward.11} parent=1 // pred_check_branch
      %26 = sbr.rel (0) target = $region25
    $region24: #{model_forward.11} parent=1 // pred_region
      _
    $region25: #{model_forward.11} parent=1 // pred_fallthru
      _
    // Predicated region
    $region26: #{model_forward.11} parent=1 // pred_check
      _
    $region27: #{model_forward.11} parent=1 // pred_check_branch
      %28 = sbr.rel (0) target = $region29
    $region28: #{model_forward.11} parent=1 // pred_region
      _
    $region29: #{model_forward.11} parent=1 // pred_fallthru
      _
    // Predicated region
    $region30: #{model_forward.11} parent=1 // pred_check
      _
    $region31: #{model_forward.11} parent=1 // pred_check_branch
      %30 = sbr.rel (0) target = $region33
    $region32: #{model_forward.11} parent=1 // pred_region
      _
    $region33: #{model_forward.11} parent=1 // pred_fallthru
      _
    %s31 = scalar_lea.vmem %s1, 1
    %s32 = scalar_lea.vmem %s1, 1
    %v34 = vld [vmem:[%s0] sm:$0x1]
    %v35 = vunpack.c.l.bf16 %v34
    %vm36 = vcmask 517120
    %v37 = vsel %vm36, %v35, 0.0
    %38 = vadd.xlane.f32.xlu0 %v37
    %v39 = vpop.xlane.xlu0 %38
    %v40 = vrcp.pop 64.0
    %v41 = vmul.f32 64.0, %v40
    %v42 = vsub.f32 1.0, %v41
    %v43 = vmul.f32 %v40, %v42
    %v44 = vadd.f32 %v40, %v43
    %vm45 = vweird.f32 %v40
    %v46 = vsel %vm45, %v40, %v44
    %v47 = vmul.f32 %v39, %v46
    %v48 = vsub.f32 %v35, %v47
    %v49 = vmul.f32 %v48, %v48
    %v50 = vsel %vm36, %v49, 0.0
    %51 = vadd.xlane.f32.xlu0 %v50
    %v52 = vpop.xlane.xlu0 %51
    %v53 = vmul.f32 %v52, %v46
    %v54 = vadd.f32 %v53, 1e-06
    %v55 = vrsqrt.pop %v54
    %v56 = vmul.f32 %v55, %v54
    %v57 = vmul.f32 %v56, %v55
    %v58 = vmul.f32 0.5, %v57
    %v59 = vsub.f32 1.5, %v58
    %v60 = vmul.f32 %v55, %v59
    %vm61 = vweird.f32 %v54
    %vm62 = vweird.f32 %v55
    %vm63 = vmor %vm61, %vm62
    %v64 = vsel %vm63, %v55, %v60
    %v65 = vmul.f32 %v48, %v64
    %v66 = vld [vmem:[%s2] sm:$0x1]
    %v68 = vperm.slane %v66, 0
    %v70 = vmul.f32 %v65, %v68
    %v71 = vld [vmem:[%s3] sm:$0x1]
    %v73 = vperm.slane %v71, 0
    %v75 = vadd.f32 %v70, %v73
    %v76 = vld [vmem:[%s32] sm:$0x1]
    %v77 = vunpack.c.l.bf16 %v76
    %v78 = vsel %vm36, %v77, 0.0
    %79 = vadd.xlane.f32.xlu0 %v78
    %v80 = vpop.xlane.xlu0 %79
    %v81 = vmul.f32 %v80, %v46
    %v82 = vsub.f32 %v77, %v81
    %v83 = vmul.f32 %v82, %v82
    %v84 = vsel %vm36, %v83, 0.0
    %85 = vadd.xlane.f32.xlu0 %v84
    %v86 = vpop.xlane.xlu0 %85
    %v87 = vmul.f32 %v86, %v46
    %v88 = vadd.f32 %v87, 1e-06
    %v89 = vrsqrt.pop %v88
    %v90 = vmul.f32 %v89, %v88
    %v91 = vmul.f32 %v90, %v89
    %v92 = vmul.f32 0.5, %v91
    %v93 = vsub.f32 1.5, %v92
    %v94 = vmul.f32 %v89, %v93
    %vm95 = vweird.f32 %v88
    %vm96 = vweird.f32 %v89
    %vm97 = vmor %vm95, %vm96
    %v98 = vsel %vm97, %v89, %v94
    %v99 = vmul.f32 %v82, %v98
    %v100 = vmul.f32 %v99, %v68
    %v101 = vadd.f32 %v100, %v73
    %v102 = vsub.f32 %v75, %v101
    %v103 = vpack.c.bf16 %v102, %v102
    %v104 = vld [vmem:[%s4] sm:$0xf]
    %v105 = vld [vmem:[%s4 + $0x4] sm:$0xf]
    %v106 = vld [vmem:[%s4 + $0x8] sm:$0xf]
    %v107 = vld [vmem:[%s4 + $0xc] sm:$0xf]
    %v108 = vld [vmem:[%s4 + $0x10] sm:$0xf]
    %v109 = vld [vmem:[%s4 + $0x14] sm:$0xf]
    %v110 = vld [vmem:[%s4 + $0x18] sm:$0xf]
    %v111 = vld [vmem:[%s4 + $0x1c] sm:$0xf]
    %v120 = vunpack.c.l.b16 %v104
    %v121 = vunpack.c.l.b16 %v105
    %v122 = vunpack.c.l.b16 %v106
    %v123 = vunpack.c.l.b16 %v107
    %v124 = vunpack.c.l.b16 %v108
    %v125 = vunpack.c.l.b16 %v109
    %v126 = vunpack.c.l.b16 %v110
    %v127 = vunpack.c.l.b16 %v111
    %v128 = vpack.c.b16 %v121, %v120
    %v129 = vpack.c.b16 %v123, %v122
    %v130 = vpack.c.b16 %v125, %v124
    %v131 = vpack.c.b16 %v127, %v126
    %vm136 = vcmask 523264
    %v138 = vsel %vm136, %v103, 0
    %140 = vmatpush.bf16.msra.mxu0 0
    %141 = vmatpush.bf16.msra.mxu0 0
    %142 = vmatpush.bf16.msra.mxu0 0
    %143 = vmatpush.bf16.msra.mxu0 0
    %144 = vmatpush.bf16.msra.mxu0 %v131
    %145 = vmatpush.bf16.msra.mxu0 %v130
    %146 = vmatpush.bf16.msra.mxu0 %v129
    %147 = vmatpush.bf16.msra.mxu0 %v128
    %148 = vmatmul.bf16.gmra.mxu0 %v138
    %v149 = vpop.f32.mrf.mxu0
    %v150 = vadd.f32 0.0, %v149
    %v151 = vpop.f32.mrf.mxu0
    %152 = vdwg.mxu0
    %v153 = vld [vmem:[%s5] sm:$0x1]
    %v155 = vperm.slane %v153, 0
    %v157 = vadd.f32 %v150, %v155
    %v158 = vmax.f32 %v157, 0.0
    %v159 = vsub.f32 %v155, %v150
    %v160 = vmax.f32 %v159, 0.0
    %v161 = vadd.f32 %v158, %v160
    %v162 = vmul.f32 %v161, 0.5
    %v163 = vpack.c.bf16 %v162, %v162
    %v164 = vld [vmem:[%s6] sm:$0xf]
    %v165 = vld [vmem:[%s6 + $0x4] sm:$0xf]
    %v166 = vld [vmem:[%s6 + $0x8] sm:$0xf]
    %v167 = vld [vmem:[%s6 + $0xc] sm:$0xf]
    %v168 = vld [vmem:[%s6 + $0x10] sm:$0xf]
    %v169 = vld [vmem:[%s6 + $0x14] sm:$0xf]
    %v170 = vld [vmem:[%s6 + $0x18] sm:$0xf]
    %v171 = vld [vmem:[%s6 + $0x1c] sm:$0xf]
    %v172 = vld [vmem:[%s6 + $0x20] sm:$0xf]
    %v173 = vld [vmem:[%s6 + $0x24] sm:$0xf]
    %v174 = vld [vmem:[%s6 + $0x28] sm:$0xf]
    %v175 = vld [vmem:[%s6 + $0x2c] sm:$0xf]
    %v176 = vld [vmem:[%s6 + $0x30] sm:$0xf]
    %v177 = vld [vmem:[%s6 + $0x34] sm:$0xf]
    %v178 = vld [vmem:[%s6 + $0x38] sm:$0xf]
    %v179 = vld [vmem:[%s6 + $0x3c] sm:$0xf]
    %v180 = vld [vmem:[%s7] sm:$0x1]
    %v182 = vperm.slane %v180, 0
    %v200 = vunpack.c.l.b16 %v164
    %v201 = vunpack.c.l.b16 %v165
    %v202 = vunpack.c.l.b16 %v166
    %v203 = vunpack.c.l.b16 %v167
    %v204 = vunpack.c.l.b16 %v168
    %v205 = vunpack.c.l.b16 %v169
    %v206 = vunpack.c.l.b16 %v170
    %v207 = vunpack.c.l.b16 %v171
    %v208 = vunpack.c.l.b16 %v172
    %v209 = vunpack.c.l.b16 %v173
    %v210 = vunpack.c.l.b16 %v174
    %v211 = vunpack.c.l.b16 %v175
    %v212 = vunpack.c.l.b16 %v176
    %v213 = vunpack.c.l.b16 %v177
    %v214 = vunpack.c.l.b16 %v178
    %v215 = vunpack.c.l.b16 %v179
    %v216 = vpack.c.b16 %v201, %v200
    %v217 = vpack.c.b16 %v203, %v202
    %v218 = vpack.c.b16 %v205, %v204
    %v219 = vpack.c.b16 %v207, %v206
    %v220 = vpack.c.b16 %v209, %v208
    %v221 = vpack.c.b16 %v211, %v210
    %v222 = vpack.c.b16 %v213, %v212
    %v223 = vpack.c.b16 %v215, %v214
    %232 = vmatpush.bf16.msra.mxu0 %v223
    %233 = vmatpush.bf16.msra.mxu0 %v222
    %234 = vmatpush.bf16.msra.mxu0 %v221
    %235 = vmatpush.bf16.msra.mxu0 %v220
    %236 = vmatpush.bf16.msra.mxu0 %v219
    %237 = vmatpush.bf16.msra.mxu0 %v218
    %238 = vmatpush.bf16.msra.mxu0 %v217
    %239 = vmatpush.bf16.msra.mxu0 %v216
    %240 = vmatmul.bf16.gmra.mxu0 %v163
    %v241 = vpop.f32.mrf.mxu0
    %v242 = vadd.f32 %v182, %v241
    %v243 = vpop.f32.mrf.mxu0
    %244 = vdwg.mxu0
    %245 = vst [vmem:[#allocation2] sm:$0x3] %v242
    // Predicated region
    $region34: #{model_forward.11} parent=1 // pred_check
      _
    $region35: #{model_forward.11} parent=1 // pred_check_branch
      %247 = sbr.rel (0) target = $region37
    $region36: #{model_forward.11} parent=1 // pred_region
      %249 = vsyncadd [#allocation3], 0
      %s251 = sshll.u32 [#allocation2], 4
      %s252 = int_to_ptr.vmem [resolvable:$true] %s251
      %s253 = sshll.u32 %s8, 4
      %s254 = int_to_ptr.hbm [resolvable:$true] %s253
      %256 = dma.vmem_to_hbm [thread:$0]  %s252, 32, %s254, [#allocation3]
    $region37: #{model_forward.11} parent=1 // pred_fallthru
      _
    // Predicated region
    $region38: #{model_forward.11} parent=1 // pred_check
      _
    $region39: #{model_forward.11} parent=1 // pred_check_branch
      %258 = sbr.rel (0) target = $region41
    $region40: #{model_forward.11} parent=1 // pred_region
      %260 = dma.done [#allocation3], 32
    $region41: #{model_forward.11} parent=1 // pred_fallthru
      _
    %261 = vsyncpa [#allocation3], 1

</llo_original>
